<compile_context>
chip_gen: v6e
topology: v6e:2x2x1
jax: 0.10.0
libtpu: 0.0.40
codegen_flags: <defaults>
</compile_context>

<pallas_src>
import functools

import jax
import jax.numpy as jnp
from jax import lax
from jax.experimental import pallas as pl
from jax.experimental.pallas import tpu as pltpu

LOSS_WEIGHT = 1.0
OFFSETS_STRIDE = 4.0
KEY_ITEM_WEIGHT = 0.5
BETA = 1.0 / OFFSETS_STRIDE          # smoothL1 threshold (crit_type='smoothL1')
INTERP_TIME = 10
_BIG = 1e18                          # sentinel x-coordinate for padded gt lanes


# ---------------------------------------------------------------------------
# Contour interpolation (exact f32; mirrors DMLoss.interpolation / torch.roll).
# Used both by the wrapper (kernel input prep) and the pure-JAX reference.
# ---------------------------------------------------------------------------
def _interpolation(poly, time=INTERP_TIME):
    n, p, _ = poly.shape
    poly_roll = jnp.roll(poly, shift=1, axis=1)
    step = jnp.arange(time, dtype=jnp.float32) / time
    interp = poly[..., None] * step + poly_roll[..., None] * (1.0 - step)   # (N,P,2,T)
    return jnp.transpose(interp, (0, 1, 3, 2)).reshape(n, p * time, 2)       # (N,P*T,2)


# ---------------------------------------------------------------------------
# Pallas kernel: dynamic matching + smooth-L1 partial sums for a batch block
# ---------------------------------------------------------------------------
def _dm_kernel(tgtx_ref, tgty_ref, po_ref, pd2_ref, kpm_ref, out_ref,
               *, num_points, beta, stride):
    P = num_points
    inv_stride = 1.0 / stride
    half_over_beta = 0.5 / beta
    half_beta = 0.5 * beta

    def smooth_l1(pred, target):
        diff = jnp.abs(pred - target)
        return jnp.where(diff < beta, half_over_beta * diff * diff, diff - half_beta)

    # ---------------- item 1: nearest interpolated gt point per pred point ---
    tx = tgtx_ref[...]                       # (B, 1, G_pad)   lane-dense targets
    ty = tgty_ref[...]                       # (B, 1, G_pad)
    po = po_ref[...]                         # (B, 4*P, 1)     points on sublanes
    px = po[:, 0 * P:1 * P, :]               # (B, P, 1)
    py = po[:, 1 * P:2 * P, :]
    ox = po[:, 2 * P:3 * P, :]
    oy = po[:, 3 * P:4 * P, :]

    g_pad = tx.shape[2]
    d1 = (px - tx) ** 2 + (py - ty) ** 2                         # (B, P, G_pad)
    min1 = jnp.min(d1, axis=2, keepdims=True)                    # (B, P, 1)
    g_iota = lax.broadcasted_iota(jnp.int32, (1, 1, g_pad), 2)
    idx1 = jnp.min(jnp.where(d1 == min1, g_iota, g_pad),
                   axis=2, keepdims=True)                        # first argmin (B,P,1)
    onehot1 = g_iota == idx1                                     # (B, P, G_pad)
    sel_x = jnp.sum(jnp.where(onehot1, tx, 0.0), axis=2, keepdims=True)   # (B,P,1)
    sel_y = jnp.sum(jnp.where(onehot1, ty, 0.0), axis=2, keepdims=True)
    t1x = (sel_x - px) * inv_stride
    t1y = (sel_y - py) * inv_stride
    loss1_sum = jnp.sum(smooth_l1(ox, t1x) + smooth_l1(oy, t1y))

    # ---------------- item 2: nearest pred point per key point ---------------
    pd2 = pd2_ref[0]                         # (4, P, B*K)
    px2 = pd2[0]                             # (P, B*K)
    py2 = pd2[1]
    ox2 = pd2[2]
    oy2 = pd2[3]
    kpm = kpm_ref[0]                         # (3, B*K)
    kx = kpm[0:1, :]                         # (1, B*K)
    ky = kpm[1:2, :]
    msk = kpm[2:3, :]

    d2 = (px2 - kx) ** 2 + (py2 - ky) ** 2                       # (P, B*K)
    min2 = jnp.min(d2, axis=0, keepdims=True)                    # (1, B*K)
    q_iota = lax.broadcasted_iota(jnp.int32, (P, 1), 0)
    idx2 = jnp.min(jnp.where(d2 == min2, q_iota, P),
                   axis=0, keepdims=True)                        # first argmin (1,B*K)
    onehot2 = q_iota == idx2                                     # (P, B*K)
    psel_x = jnp.sum(jnp.where(onehot2, px2, 0.0), axis=0, keepdims=True)
    psel_y = jnp.sum(jnp.where(onehot2, py2, 0.0), axis=0, keepdims=True)
    osel_x = jnp.sum(jnp.where(onehot2, ox2, 0.0), axis=0, keepdims=True)
    osel_y = jnp.sum(jnp.where(onehot2, oy2, 0.0), axis=0, keepdims=True)
    t2x = (kx - psel_x) * inv_stride
    t2y = (ky - psel_y) * inv_stride
    l2_elem = (smooth_l1(osel_x, t2x) + smooth_l1(osel_y, t2y)) * msk
    loss2_sum = jnp.sum(l2_elem)
    cnt2 = jnp.sum(msk) * 2.0

    # ---- per-block partial stats into one lane-aligned (8,128) slab ---------
    lane = lax.broadcasted_iota(jnp.int32, (8, 128), 1)
    sub = lax.broadcasted_iota(jnp.int32, (8, 128), 0)
    row0 = sub == 0
    stats = (jnp.where(row0 & (lane == 0), loss1_sum, 0.0)
             + jnp.where(row0 & (lane == 1), loss2_sum, 0.0)
             + jnp.where(row0 & (lane == 2), cnt2, 0.0))
    out_ref[0] = stats


def _pad_batch(x, pad):
    if pad == 0:
        return x
    cfg = [(0, pad)] + [(0, 0)] * (x.ndim - 1)
    return jnp.pad(x, cfg)


def dm_loss_pallas(pred_contours, pred_offsets, gt_contours, gt_key_points,
                   gt_key_points_mask, *, block_b=64, interp_time=INTERP_TIME):
    N, P, _ = pred_contours.shape
    K = gt_key_points.shape[1]
    if P % 8 != 0:
        # TODO(synk): support point counts that are not a multiple of 8.
        raise ValueError("dm_loss_pallas requires num_points % 8 == 0")

    G = P * interp_time
    g_pad = ((G + 127) // 128) * 128

    nb = pl.cdiv(N, block_b)
    n_pad = nb * block_b
    pad = n_pad - N
    bk = block_b * K

    pc = pred_contours.astype(jnp.float32)
    po = pred_offsets.astype(jnp.float32)
    gc = gt_contours.astype(jnp.float32)
    kp = gt_key_points.astype(jnp.float32)
    mk = gt_key_points_mask.astype(jnp.float32)

    # -- item-1 targets: interpolated gt contour, lane-dense, sentinel-padded --
    tgt = _interpolation(gc, interp_time)                          # (N, G, 2)
    tgt_x = jnp.pad(tgt[:, :, 0], ((0, 0), (0, g_pad - G)), constant_values=_BIG)
    tgt_y = jnp.pad(tgt[:, :, 1], ((0, 0), (0, g_pad - G)))
    tgt_x = _pad_batch(tgt_x, pad)[:, None, :]                     # (n_pad, 1, G_pad)
    tgt_y = _pad_batch(tgt_y, pad)[:, None, :]

    # -- item-1 pred/off: contour points on sublanes ---------------------------
    po_sub = jnp.concatenate(
        [pc[:, :, 0], pc[:, :, 1], po[:, :, 0], po[:, :, 1]], axis=1)   # (N, 4P)
    po_sub = _pad_batch(po_sub, pad)[:, :, None]                        # (n_pad, 4P, 1)

    # -- item-2 pred/off: (4, P, block_b*K), key-point column b*K+k ------------
    pd2 = jnp.concatenate([pc, po], axis=-1)                            # (N, P, 4)
    pd2 = _pad_batch(pd2, pad).reshape(nb, block_b, P, 4)
    pd2 = jnp.transpose(pd2, (0, 3, 2, 1))                              # (nb, 4, P, B)
    pd2 = jnp.broadcast_to(pd2[..., None],
                           (nb, 4, P, block_b, K)).reshape(nb, 4, P, bk)

    # -- item-2 key points + mask merged into one lane-dense stream ------------
    kx = _pad_batch(kp[:, :, 0], pad).reshape(nb, bk)
    ky = _pad_batch(kp[:, :, 1], pad).reshape(nb, bk)
    mr = _pad_batch(mk, pad).reshape(nb, bk)
    kpm = jnp.stack([kx, ky, mr], axis=1)                               # (nb, 3, B*K)

    kernel = functools.partial(_dm_kernel, num_points=P, beta=BETA,
                               stride=OFFSETS_STRIDE)

    out = pl.pallas_call(
        kernel,
        out_shape=jax.ShapeDtypeStruct((nb, 8, 128), jnp.float32),
        grid_spec=pltpu.PrefetchScalarGridSpec(
            num_scalar_prefetch=0,
            grid=(nb,),
            in_specs=[
                pl.BlockSpec((block_b, 1, g_pad), lambda b: (b, 0, 0)),   # tgt_x
                pl.BlockSpec((block_b, 1, g_pad), lambda b: (b, 0, 0)),   # tgt_y
                pl.BlockSpec((block_b, 4 * P, 1), lambda b: (b, 0, 0)),   # pred/off (item 1)
                pl.BlockSpec((1, 4, P, bk), lambda b: (b, 0, 0, 0)),      # pred/off (item 2)
                pl.BlockSpec((1, 3, bk), lambda b: (b, 0, 0)),            # key pts + mask
            ],
            out_specs=pl.BlockSpec((1, 8, 128), lambda b: (b, 0, 0)),
        ),
        compiler_params=pltpu.CompilerParams(
            dimension_semantics=("parallel",)),
    )(tgt_x, tgt_y, po_sub, pd2, kpm)

    loss1_sum = jnp.sum(out[:, 0, 0])
    loss2_sum = jnp.sum(out[:, 0, 1])
    cnt2 = jnp.sum(out[:, 0, 2])

    loss1 = loss1_sum / (N * P * 2)                       # mean over all item-1 elements
    loss2 = jnp.where(cnt2 > 0, loss2_sum / jnp.maximum(cnt2, 1.0), 0.0)
    return (loss1 * (1.0 - KEY_ITEM_WEIGHT) + loss2 * KEY_ITEM_WEIGHT) * LOSS_WEIGHT


# ---------------------------------------------------------------------------
# Pure-JAX reference (mirrors the PyTorch module) for a correctness check
# ---------------------------------------------------------------------------
def _smooth_l1_ref(p, t, beta):
    diff = jnp.abs(p - t)
    return jnp.where(diff < beta, 0.5 * diff * diff / beta, diff - 0.5 * beta)


def dm_loss_ref(pred, off, gt, kp, mask):
    pred = pred.astype(jnp.float32)
    off = off.astype(jnp.float32)
    tgt = _interpolation(gt.astype(jnp.float32))                             # (N, G, 2)
    # item 1
    d1 = jnp.sum((tgt[:, :, None, :] - pred[:, None, :, :]) ** 2, axis=-1)   # (N, G, P)
    idx1 = jnp.argmin(d1, axis=1)                                            # (N, P)
    tgt_sel = jnp.take_along_axis(tgt, idx1[..., None], axis=1)              # (N, P, 2)
    t1 = (tgt_sel - pred) / OFFSETS_STRIDE
    loss1 = jnp.mean(_smooth_l1_ref(off, t1, BETA))
    # item 2
    kp = kp.astype(jnp.float32)
    d2 = jnp.sum((kp[:, None, :, :] - pred[:, :, None, :]) ** 2, axis=-1)    # (N, P, K)
    idx2 = jnp.argmin(d2, axis=1)                                            # (N, K)
    pred_sel = jnp.take_along_axis(pred, idx2[..., None], axis=1)            # (N, K, 2)
    off_sel = jnp.take_along_axis(off, idx2[..., None], axis=1)
    t2 = (kp - pred_sel) / OFFSETS_STRIDE
    l2 = _smooth_l1_ref(off_sel, t2, BETA)
    m = mask.astype(jnp.float32)[..., None]
    loss2 = jnp.sum(l2 * m) / (jnp.sum(m) * 2.0)
    return (loss1 * (1.0 - KEY_ITEM_WEIGHT) + loss2 * KEY_ITEM_WEIGHT) * LOSS_WEIGHT


if __name__ == "__main__":
    key = jax.random.PRNGKey(0)
    k1, k2, k3, k4, k5 = jax.random.split(key, 5)

    N, P, K = 37, 8, 8            # G = P*10 = 80 interpolated gt points per contour

    pred_contours = jax.random.uniform(k1, (N, P, 2), jnp.float32) * 16.0
    pred_offsets = jax.random.normal(k2, (N, P, 2), jnp.float32)
    gt_contours = jax.random.uniform(k3, (N, P, 2), jnp.float32) * 16.0
    gt_key_points = jax.random.uniform(k4, (N, K, 2), jnp.float32) * 16.0
    gt_key_points_mask = (jax.random.uniform(k5, (N, K), jnp.float32) > 0.3)
    gt_key_points_mask = gt_key_points_mask.at[:, 0].set(True)   # ensure non-empty mask

    # small batch in the test -> small block so the multi-block grid and the
    # zero-padded tail samples are exercised (default block_b=64 for real runs).
    out = dm_loss_pallas(pred_contours, pred_offsets, gt_contours,
                         gt_key_points, gt_key_points_mask, block_b=16)
    jax.block_until_ready(out)

    ref = dm_loss_ref(pred_contours, pred_offsets, gt_contours,
                      gt_key_points, gt_key_points_mask)
    assert jnp.allclose(out, ref, rtol=5e-5, atol=1e-6), (out, ref)

    print("KERNEL_OK")
</pallas_src>

<mosaic_0001>
module attributes {stable_mosaic.version = 11 : i64} {
  func.func @_dm_kernel(%arg0: i32, %arg1: memref<16x1x128xf32, #tpu.memory_space<vmem>>, %arg2: memref<16x1x128xf32, #tpu.memory_space<vmem>>, %arg3: memref<16x32x1xf32, #tpu.memory_space<vmem>>, %arg4: memref<1x4x8x128xf32, #tpu.memory_space<vmem>>, %arg5: memref<1x3x128xf32, #tpu.memory_space<vmem>>, %arg6: memref<1x8x128xf32, #tpu.memory_space<vmem>>) attributes {dimension_semantics = [#tpu.dimension_semantics<parallel>], iteration_bounds = array<i64: 3>, scalar_prefetch = 0 : i64, scratch_operands = 0 : i64, tpu.core_type = #tpu.core_type<tc>, window_params = [{transform_indices = @transform_0, window_bounds = array<i64: 16, 1, 128>}, {transform_indices = @transform_1, window_bounds = array<i64: 16, 1, 128>}, {transform_indices = @transform_2, window_bounds = array<i64: 16, 32, 1>}, {transform_indices = @transform_3, window_bounds = array<i64: 1, 4, 8, 128>}, {transform_indices = @transform_4, window_bounds = array<i64: 1, 3, 128>}, {transform_indices = @transform_5, window_bounds = array<i64: 1, 8, 128>}]} {
    %c0 = arith.constant 0 : index
    %c0_0 = arith.constant 0 : index
    %c0_1 = arith.constant 0 : index
    %0 = vector.load %arg1[%c0, %c0_0, %c0_1] : memref<16x1x128xf32, #tpu.memory_space<vmem>>, vector<16x1x128xf32>
    %c0_2 = arith.constant 0 : index
    %c0_3 = arith.constant 0 : index
    %c0_4 = arith.constant 0 : index
    %1 = vector.load %arg2[%c0_2, %c0_3, %c0_4] : memref<16x1x128xf32, #tpu.memory_space<vmem>>, vector<16x1x128xf32>
    %c0_5 = arith.constant 0 : index
    %c0_6 = arith.constant 0 : index
    %c0_7 = arith.constant 0 : index
    %2 = vector.load %arg3[%c0_5, %c0_6, %c0_7] : memref<16x32x1xf32, #tpu.memory_space<vmem>>, vector<16x32x1xf32>
    %3 = vector.extract_strided_slice %2 {offsets = [0, 0, 0], sizes = [16, 8, 1], strides = [1, 1, 1]} : vector<16x32x1xf32> to vector<16x8x1xf32>
    %4 = vector.extract_strided_slice %2 {offsets = [0, 8, 0], sizes = [16, 8, 1], strides = [1, 1, 1]} : vector<16x32x1xf32> to vector<16x8x1xf32>
    %5 = vector.extract_strided_slice %2 {offsets = [0, 16, 0], sizes = [16, 8, 1], strides = [1, 1, 1]} : vector<16x32x1xf32> to vector<16x8x1xf32>
    %6 = vector.extract_strided_slice %2 {offsets = [0, 24, 0], sizes = [16, 8, 1], strides = [1, 1, 1]} : vector<16x32x1xf32> to vector<16x8x1xf32>
    %7 = vector.broadcast %3 : vector<16x8x1xf32> to vector<16x8x128xf32>
    %8 = vector.broadcast %0 : vector<16x1x128xf32> to vector<16x8x128xf32>
    %9 = arith.subf %7, %8 : vector<16x8x128xf32>
    %10 = arith.mulf %9, %9 : vector<16x8x128xf32>
    %11 = vector.broadcast %4 : vector<16x8x1xf32> to vector<16x8x128xf32>
    %12 = vector.broadcast %1 : vector<16x1x128xf32> to vector<16x8x128xf32>
    %13 = arith.subf %11, %12 : vector<16x8x128xf32>
    %14 = arith.mulf %13, %13 : vector<16x8x128xf32>
    %15 = arith.addf %10, %14 : vector<16x8x128xf32>
    %cst = arith.constant dense<0x7F800000> : vector<16x8xf32>
    %16 = vector.multi_reduction <minimumf>, %15, %cst [2] : vector<16x8x128xf32> to vector<16x8xf32>
    %17 = vector.shape_cast %16 : vector<16x8xf32> to vector<16x8x1xf32>
    %18 = tpu.iota {dimensions = array<i32: 2>} : vector<1x1x128xi32>
    %19 = vector.broadcast %17 : vector<16x8x1xf32> to vector<16x8x128xf32>
    %20 = arith.cmpf oeq, %15, %19 : vector<16x8x128xf32>
    %c128_i32 = arith.constant 128 : i32
    %21 = vector.shape_cast %18 : vector<1x1x128xi32> to vector<1x1x128xi32>
    %22 = vector.broadcast %21 : vector<1x1x128xi32> to vector<16x8x128xi32>
    %23 = vector.broadcast %c128_i32 : i32 to vector<16x8x128xi32>
    %24 = arith.select %20, %22, %23 : vector<16x8x128xi1>, vector<16x8x128xi32>
    %cst_8 = arith.constant dense<2147483647> : vector<16x8xi32>
    %25 = vector.multi_reduction <minsi>, %24, %cst_8 [2] : vector<16x8x128xi32> to vector<16x8xi32>
    %26 = vector.shape_cast %25 : vector<16x8xi32> to vector<16x8x1xi32>
    %27 = vector.broadcast %18 : vector<1x1x128xi32> to vector<16x8x128xi32>
    %28 = vector.broadcast %26 : vector<16x8x1xi32> to vector<16x8x128xi32>
    %29 = arith.cmpi eq, %27, %28 : vector<16x8x128xi32>
    %cst_9 = arith.constant 0.000000e+00 : f32
    %30 = vector.shape_cast %0 : vector<16x1x128xf32> to vector<16x1x128xf32>
    %31 = vector.broadcast %30 : vector<16x1x128xf32> to vector<16x8x128xf32>
    %32 = vector.broadcast %cst_9 : f32 to vector<16x8x128xf32>
    %33 = arith.select %29, %31, %32 : vector<16x8x128xi1>, vector<16x8x128xf32>
    %cst_10 = arith.constant dense<0.000000e+00> : vector<16x8xf32>
    %34 = vector.multi_reduction <add>, %33, %cst_10 [2] : vector<16x8x128xf32> to vector<16x8xf32>
    %35 = vector.shape_cast %34 : vector<16x8xf32> to vector<16x8x1xf32>
    %cst_11 = arith.constant 0.000000e+00 : f32
    %36 = vector.shape_cast %1 : vector<16x1x128xf32> to vector<16x1x128xf32>
    %37 = vector.broadcast %36 : vector<16x1x128xf32> to vector<16x8x128xf32>
    %38 = vector.broadcast %cst_11 : f32 to vector<16x8x128xf32>
    %39 = arith.select %29, %37, %38 : vector<16x8x128xi1>, vector<16x8x128xf32>
    %cst_12 = arith.constant dense<0.000000e+00> : vector<16x8xf32>
    %40 = vector.multi_reduction <add>, %39, %cst_12 [2] : vector<16x8x128xf32> to vector<16x8xf32>
    %41 = vector.shape_cast %40 : vector<16x8xf32> to vector<16x8x1xf32>
    %42 = arith.subf %35, %3 : vector<16x8x1xf32>
    %cst_13 = arith.constant 2.500000e-01 : f32
    %43 = vector.broadcast %cst_13 : f32 to vector<16x8x1xf32>
    %44 = arith.mulf %42, %43 : vector<16x8x1xf32>
    %45 = arith.subf %41, %4 : vector<16x8x1xf32>
    %cst_14 = arith.constant 2.500000e-01 : f32
    %46 = vector.broadcast %cst_14 : f32 to vector<16x8x1xf32>
    %47 = arith.mulf %45, %46 : vector<16x8x1xf32>
    %48 = arith.subf %5, %44 : vector<16x8x1xf32>
    %49 = math.absf %48 : vector<16x8x1xf32>
    %cst_15 = arith.constant 2.500000e-01 : f32
    %50 = vector.broadcast %cst_15 : f32 to vector<16x8x1xf32>
    %51 = arith.cmpf olt, %49, %50 : vector<16x8x1xf32>
    %cst_16 = arith.constant 2.000000e+00 : f32
    %52 = vector.broadcast %cst_16 : f32 to vector<16x8x1xf32>
    %53 = arith.mulf %52, %49 : vector<16x8x1xf32>
    %54 = arith.mulf %53, %49 : vector<16x8x1xf32>
    %cst_17 = arith.constant 1.250000e-01 : f32
    %55 = vector.broadcast %cst_17 : f32 to vector<16x8x1xf32>
    %56 = arith.subf %49, %55 : vector<16x8x1xf32>
    %57 = arith.select %51, %54, %56 : vector<16x8x1xi1>, vector<16x8x1xf32>
    %58 = arith.subf %6, %47 : vector<16x8x1xf32>
    %59 = math.absf %58 : vector<16x8x1xf32>
    %cst_18 = arith.constant 2.500000e-01 : f32
    %60 = vector.broadcast %cst_18 : f32 to vector<16x8x1xf32>
    %61 = arith.cmpf olt, %59, %60 : vector<16x8x1xf32>
    %cst_19 = arith.constant 2.000000e+00 : f32
    %62 = vector.broadcast %cst_19 : f32 to vector<16x8x1xf32>
    %63 = arith.mulf %62, %59 : vector<16x8x1xf32>
    %64 = arith.mulf %63, %59 : vector<16x8x1xf32>
    %cst_20 = arith.constant 1.250000e-01 : f32
    %65 = vector.broadcast %cst_20 : f32 to vector<16x8x1xf32>
    %66 = arith.subf %59, %65 : vector<16x8x1xf32>
    %67 = arith.select %61, %64, %66 : vector<16x8x1xi1>, vector<16x8x1xf32>
    %68 = arith.addf %57, %67 : vector<16x8x1xf32>
    %69 = vector.shape_cast %68 : vector<16x8x1xf32> to vector<1x16x8x1xf32>
    %cst_21 = arith.constant dense<0.000000e+00> : vector<1xf32>
    %70 = vector.multi_reduction <add>, %69, %cst_21 [1, 2, 3] : vector<1x16x8x1xf32> to vector<1xf32>
    %71 = vector.shape_cast %70 : vector<1xf32> to vector<1x1x1x1xf32>
    %72 = vector.extract %71[0, 0, 0, 0] : f32 from vector<1x1x1x1xf32>
    %c0_22 = arith.constant 0 : index
    %c0_23 = arith.constant 0 : index
    %c0_24 = arith.constant 0 : index
    %c0_25 = arith.constant 0 : index
    %73 = vector.load %arg4[%c0_22, %c0_23, %c0_24, %c0_25] : memref<1x4x8x128xf32, #tpu.memory_space<vmem>>, vector<1x4x8x128xf32>
    %74 = vector.shape_cast %73 : vector<1x4x8x128xf32> to vector<4x8x128xf32>
    %75 = vector.extract_strided_slice %74 {offsets = [0, 0, 0], sizes = [1, 8, 128], strides = [1, 1, 1]} : vector<4x8x128xf32> to vector<1x8x128xf32>
    %76 = vector.shape_cast %75 : vector<1x8x128xf32> to vector<8x128xf32>
    %77 = vector.extract_strided_slice %74 {offsets = [1, 0, 0], sizes = [1, 8, 128], strides = [1, 1, 1]} : vector<4x8x128xf32> to vector<1x8x128xf32>
    %78 = vector.shape_cast %77 : vector<1x8x128xf32> to vector<8x128xf32>
    %79 = vector.extract_strided_slice %74 {offsets = [2, 0, 0], sizes = [1, 8, 128], strides = [1, 1, 1]} : vector<4x8x128xf32> to vector<1x8x128xf32>
    %80 = vector.shape_cast %79 : vector<1x8x128xf32> to vector<8x128xf32>
    %81 = vector.extract_strided_slice %74 {offsets = [3, 0, 0], sizes = [1, 8, 128], strides = [1, 1, 1]} : vector<4x8x128xf32> to vector<1x8x128xf32>
    %82 = vector.shape_cast %81 : vector<1x8x128xf32> to vector<8x128xf32>
    %c0_26 = arith.constant 0 : index
    %c0_27 = arith.constant 0 : index
    %c0_28 = arith.constant 0 : index
    %83 = vector.load %arg5[%c0_26, %c0_27, %c0_28] : memref<1x3x128xf32, #tpu.memory_space<vmem>>, vector<1x3x128xf32>
    %84 = vector.shape_cast %83 : vector<1x3x128xf32> to vector<3x128xf32>
    %85 = vector.extract_strided_slice %84 {offsets = [0, 0], sizes = [1, 128], strides = [1, 1]} : vector<3x128xf32> to vector<1x128xf32>
    %86 = vector.extract_strided_slice %84 {offsets = [1, 0], sizes = [1, 128], strides = [1, 1]} : vector<3x128xf32> to vector<1x128xf32>
    %87 = vector.extract_strided_slice %84 {offsets = [2, 0], sizes = [1, 128], strides = [1, 1]} : vector<3x128xf32> to vector<1x128xf32>
    %88 = vector.broadcast %85 : vector<1x128xf32> to vector<8x128xf32>
    %89 = arith.subf %76, %88 : vector<8x128xf32>
    %90 = arith.mulf %89, %89 : vector<8x128xf32>
    %91 = vector.broadcast %86 : vector<1x128xf32> to vector<8x128xf32>
    %92 = arith.subf %78, %91 : vector<8x128xf32>
    %93 = arith.mulf %92, %92 : vector<8x128xf32>
    %94 = arith.addf %90, %93 : vector<8x128xf32>
    %cst_29 = arith.constant dense<0x7F800000> : vector<128xf32>
    %95 = vector.multi_reduction <minimumf>, %94, %cst_29 [0] : vector<8x128xf32> to vector<128xf32>
    %96 = vector.shape_cast %95 : vector<128xf32> to vector<1x128xf32>
    %97 = tpu.iota {dimensions = array<i32: 0>} : vector<8x1xi32>
    %98 = vector.broadcast %96 : vector<1x128xf32> to vector<8x128xf32>
    %99 = arith.cmpf oeq, %94, %98 : vector<8x128xf32>
    %c8_i32 = arith.constant 8 : i32
    %100 = vector.shape_cast %97 : vector<8x1xi32> to vector<8x1xi32>
    %101 = vector.broadcast %100 : vector<8x1xi32> to vector<8x128xi32>
    %102 = vector.broadcast %c8_i32 : i32 to vector<8x128xi32>
    %103 = arith.select %99, %101, %102 : vector<8x128xi1>, vector<8x128xi32>
    %cst_30 = arith.constant dense<2147483647> : vector<128xi32>
    %104 = vector.multi_reduction <minsi>, %103, %cst_30 [0] : vector<8x128xi32> to vector<128xi32>
    %105 = vector.shape_cast %104 : vector<128xi32> to vector<1x128xi32>
    %106 = vector.broadcast %97 : vector<8x1xi32> to vector<8x128xi32>
    %107 = vector.broadcast %105 : vector<1x128xi32> to vector<8x128xi32>
    %108 = arith.cmpi eq, %106, %107 : vector<8x128xi32>
    %cst_31 = arith.constant 0.000000e+00 : f32
    %109 = vector.broadcast %cst_31 : f32 to vector<8x128xf32>
    %110 = arith.select %108, %76, %109 : vector<8x128xi1>, vector<8x128xf32>
    %cst_32 = arith.constant dense<0.000000e+00> : vector<128xf32>
    %111 = vector.multi_reduction <add>, %110, %cst_32 [0] : vector<8x128xf32> to vector<128xf32>
    %112 = vector.shape_cast %111 : vector<128xf32> to vector<1x128xf32>
    %cst_33 = arith.constant 0.000000e+00 : f32
    %113 = vector.broadcast %cst_33 : f32 to vector<8x128xf32>
    %114 = arith.select %108, %78, %113 : vector<8x128xi1>, vector<8x128xf32>
    %cst_34 = arith.constant dense<0.000000e+00> : vector<128xf32>
    %115 = vector.multi_reduction <add>, %114, %cst_34 [0] : vector<8x128xf32> to vector<128xf32>
    %116 = vector.shape_cast %115 : vector<128xf32> to vector<1x128xf32>
    %cst_35 = arith.constant 0.000000e+00 : f32
    %117 = vector.broadcast %cst_35 : f32 to vector<8x128xf32>
    %118 = arith.select %108, %80, %117 : vector<8x128xi1>, vector<8x128xf32>
    %cst_36 = arith.constant dense<0.000000e+00> : vector<128xf32>
    %119 = vector.multi_reduction <add>, %118, %cst_36 [0] : vector<8x128xf32> to vector<128xf32>
    %120 = vector.shape_cast %119 : vector<128xf32> to vector<1x128xf32>
    %cst_37 = arith.constant 0.000000e+00 : f32
    %121 = vector.broadcast %cst_37 : f32 to vector<8x128xf32>
    %122 = arith.select %108, %82, %121 : vector<8x128xi1>, vector<8x128xf32>
    %cst_38 = arith.constant dense<0.000000e+00> : vector<128xf32>
    %123 = vector.multi_reduction <add>, %122, %cst_38 [0] : vector<8x128xf32> to vector<128xf32>
    %124 = vector.shape_cast %123 : vector<128xf32> to vector<1x128xf32>
    %125 = arith.subf %85, %112 : vector<1x128xf32>
    %cst_39 = arith.constant 2.500000e-01 : f32
    %126 = vector.broadcast %cst_39 : f32 to vector<1x128xf32>
    %127 = arith.mulf %125, %126 : vector<1x128xf32>
    %128 = arith.subf %86, %116 : vector<1x128xf32>
    %cst_40 = arith.constant 2.500000e-01 : f32
    %129 = vector.broadcast %cst_40 : f32 to vector<1x128xf32>
    %130 = arith.mulf %128, %129 : vector<1x128xf32>
    %131 = arith.subf %120, %127 : vector<1x128xf32>
    %132 = math.absf %131 : vector<1x128xf32>
    %cst_41 = arith.constant 2.500000e-01 : f32
    %133 = vector.broadcast %cst_41 : f32 to vector<1x128xf32>
    %134 = arith.cmpf olt, %132, %133 : vector<1x128xf32>
    %cst_42 = arith.constant 2.000000e+00 : f32
    %135 = vector.broadcast %cst_42 : f32 to vector<1x128xf32>
    %136 = arith.mulf %135, %132 : vector<1x128xf32>
    %137 = arith.mulf %136, %132 : vector<1x128xf32>
    %cst_43 = arith.constant 1.250000e-01 : f32
    %138 = vector.broadcast %cst_43 : f32 to vector<1x128xf32>
    %139 = arith.subf %132, %138 : vector<1x128xf32>
    %140 = arith.select %134, %137, %139 : vector<1x128xi1>, vector<1x128xf32>
    %141 = arith.subf %124, %130 : vector<1x128xf32>
    %142 = math.absf %141 : vector<1x128xf32>
    %cst_44 = arith.constant 2.500000e-01 : f32
    %143 = vector.broadcast %cst_44 : f32 to vector<1x128xf32>
    %144 = arith.cmpf olt, %142, %143 : vector<1x128xf32>
    %cst_45 = arith.constant 2.000000e+00 : f32
    %145 = vector.broadcast %cst_45 : f32 to vector<1x128xf32>
    %146 = arith.mulf %145, %142 : vector<1x128xf32>
    %147 = arith.mulf %146, %142 : vector<1x128xf32>
    %cst_46 = arith.constant 1.250000e-01 : f32
    %148 = vector.broadcast %cst_46 : f32 to vector<1x128xf32>
    %149 = arith.subf %142, %148 : vector<1x128xf32>
    %150 = arith.select %144, %147, %149 : vector<1x128xi1>, vector<1x128xf32>
    %151 = arith.addf %140, %150 : vector<1x128xf32>
    %152 = arith.mulf %151, %87 : vector<1x128xf32>
    %153 = vector.shape_cast %152 : vector<1x128xf32> to vector<1x1x128xf32>
    %cst_47 = arith.constant dense<0.000000e+00> : vector<1xf32>
    %154 = vector.multi_reduction <add>, %153, %cst_47 [1, 2] : vector<1x1x128xf32> to vector<1xf32>
    %155 = vector.shape_cast %154 : vector<1xf32> to vector<1x1x1xf32>
    %156 = vector.extract %155[0, 0, 0] : f32 from vector<1x1x1xf32>
    %157 = vector.shape_cast %87 : vector<1x128xf32> to vector<1x1x128xf32>
    %cst_48 = arith.constant dense<0.000000e+00> : vector<1xf32>
    %158 = vector.multi_reduction <add>, %157, %cst_48 [1, 2] : vector<1x1x128xf32> to vector<1xf32>
    %159 = vector.shape_cast %158 : vector<1xf32> to vector<1x1x1xf32>
    %160 = vector.extract %159[0, 0, 0] : f32 from vector<1x1x1xf32>
    %cst_49 = arith.constant 2.000000e+00 : f32
    %161 = arith.mulf %160, %cst_49 : f32
    %162 = tpu.iota {dimensions = array<i32: 1>} : vector<8x128xi32>
    %163 = tpu.iota {dimensions = array<i32: 0>} : vector<8x128xi32>
    %c0_i32 = arith.constant 0 : i32
    %164 = vector.broadcast %c0_i32 : i32 to vector<8x128xi32>
    %165 = arith.cmpi eq, %163, %164 : vector<8x128xi32>
    %c0_i32_50 = arith.constant 0 : i32
    %166 = vector.broadcast %c0_i32_50 : i32 to vector<8x128xi32>
    %167 = arith.cmpi eq, %162, %166 : vector<8x128xi32>
    %168 = arith.andi %165, %167 : vector<8x128xi1>
    %cst_51 = arith.constant 0.000000e+00 : f32
    %169 = vector.broadcast %72 : f32 to vector<8x128xf32>
    %170 = vector.broadcast %cst_51 : f32 to vector<8x128xf32>
    %171 = arith.select %168, %169, %170 : vector<8x128xi1>, vector<8x128xf32>
    %c1_i32 = arith.constant 1 : i32
    %172 = vector.broadcast %c1_i32 : i32 to vector<8x128xi32>
    %173 = arith.cmpi eq, %162, %172 : vector<8x128xi32>
    %174 = arith.andi %165, %173 : vector<8x128xi1>
    %cst_52 = arith.constant 0.000000e+00 : f32
    %175 = vector.broadcast %156 : f32 to vector<8x128xf32>
    %176 = vector.broadcast %cst_52 : f32 to vector<8x128xf32>
    %177 = arith.select %174, %175, %176 : vector<8x128xi1>, vector<8x128xf32>
    %178 = arith.addf %171, %177 : vector<8x128xf32>
    %c2_i32 = arith.constant 2 : i32
    %179 = vector.broadcast %c2_i32 : i32 to vector<8x128xi32>
    %180 = arith.cmpi eq, %162, %179 : vector<8x128xi32>
    %181 = arith.andi %165, %180 : vector<8x128xi1>
    %cst_53 = arith.constant 0.000000e+00 : f32
    %182 = vector.broadcast %161 : f32 to vector<8x128xf32>
    %183 = vector.broadcast %cst_53 : f32 to vector<8x128xf32>
    %184 = arith.select %181, %182, %183 : vector<8x128xi1>, vector<8x128xf32>
    %185 = arith.addf %178, %184 : vector<8x128xf32>
    %c0_54 = arith.constant 0 : index
    %c0_55 = arith.constant 0 : index
    %c0_56 = arith.constant 0 : index
    %186 = vector.load %arg6[%c0_54, %c0_55, %c0_56] : memref<1x8x128xf32, #tpu.memory_space<vmem>>, vector<1x8x128xf32>
    %187 = vector.shape_cast %186 : vector<1x8x128xf32> to vector<8x128xf32>
    %188 = vector.shape_cast %185 : vector<8x128xf32> to vector<1x8x128xf32>
    tpu.vector_store %arg6[%c0_54, %c0_55, %c0_56], %188 {strides = array<i32>} : memref<1x8x128xf32, #tpu.memory_space<vmem>>, vector<1x8x128xf32>,
    return
  }
  func.func @transform_0(%arg0: i32) -> (i32, i32, i32) {
    %c0_i32 = arith.constant 0 : i32
    %c0_i32_0 = arith.constant 0 : i32
    %c0_i32_1 = arith.constant 0 : i32
    return %arg0, %c0_i32, %c0_i32_0 : i32, i32, i32
  }
  func.func @transform_1(%arg0: i32) -> (i32, i32, i32) {
    %c0_i32 = arith.constant 0 : i32
    %c0_i32_0 = arith.constant 0 : i32
    %c0_i32_1 = arith.constant 0 : i32
    return %arg0, %c0_i32, %c0_i32_0 : i32, i32, i32
  }
  func.func @transform_2(%arg0: i32) -> (i32, i32, i32) {
    %c0_i32 = arith.constant 0 : i32
    %c0_i32_0 = arith.constant 0 : i32
    %c0_i32_1 = arith.constant 0 : i32
    return %arg0, %c0_i32, %c0_i32_0 : i32, i32, i32
  }
  func.func @transform_3(%arg0: i32) -> (i32, i32, i32, i32) {
    %c0_i32 = arith.constant 0 : i32
    %c0_i32_0 = arith.constant 0 : i32
    %c0_i32_1 = arith.constant 0 : i32
    %c0_i32_2 = arith.constant 0 : i32
    return %arg0, %c0_i32, %c0_i32_0, %c0_i32_1 : i32, i32, i32, i32
  }
  func.func @transform_4(%arg0: i32) -> (i32, i32, i32) {
    %c0_i32 = arith.constant 0 : i32
    %c0_i32_0 = arith.constant 0 : i32
    %c0_i32_1 = arith.constant 0 : i32
    return %arg0, %c0_i32, %c0_i32_0 : i32, i32, i32
  }
  func.func @transform_5(%arg0: i32) -> (i32, i32, i32) {
    %c0_i32 = arith.constant 0 : i32
    %c0_i32_0 = arith.constant 0 : i32
    %c0_i32_1 = arith.constant 0 : i32
    return %arg0, %c0_i32, %c0_i32_0 : i32, i32, i32
  }
}

</mosaic_0001>

<llo_original>
// kernel: tpu_custom_call.1
$region0: #{tpu_custom_call.1}
  #allocation0 [shape = 'u32[]', space=smem, size = 0x4, offset = 0x4, fixed_abs, tag = 'smem constant byte address 0x4 - core index']
  #allocation1 [shape = 'u32[144,128]{1,0:T(1,128)}', space=vmem, size = 0x12000, scoped, tag = 'internal scratch']
  %s0 = inlined_call_operand.vmem [shape: f32[48,1,128], index: 0, kind: input, shape index: {}]
  %s1 = inlined_call_operand.vmem [shape: f32[48,1,128], index: 1, kind: input, shape index: {}]
  %s2 = inlined_call_operand.vmem [shape: f32[48,32,1], index: 2, kind: input, shape index: {}]
  %s3 = inlined_call_operand.vmem [shape: f32[3,4,8,128], index: 3, kind: input, shape index: {}]
  %s4 = inlined_call_operand.vmem [shape: f32[3,3,128], index: 4, kind: input, shape index: {}]
  %s5 = inlined_call_operand.hbm [shape: f32[3,8,128], index: 5, kind: output, shape index: {}]
  %s6 = sld [smem:[#allocation0]]
  $region53: #{tpu_custom_call.1} parent=0
    _
  %s8 = ssub.s32 1, %s6
  %s9 = scalar_select 0, %s8, %s6
  $region1: #{tpu_custom_call.1} parent=0
    #allocation2 [shape = 'u8[8192]{0}', space=vmem, size = 0x2000, scoped, tag = 'output window, operand 0']
    #allocation3 [shape = 's32[2]{0}', space=sflag, size = 0x8, scoped, tag = 'scoped memory for tpu_custom_call.1']
    %10 = vsyncpa [#allocation3], 0
    %s11 = scalar_lea.sflag [#allocation3], 1
    %12 = vsyncpa %s11, 0
    loop: start=0, step=1, limit=5
    $region2: #{tpu_custom_call.1} parent=1 // loop_pre_header
      _
    $region3: #{tpu_custom_call.1} parent=1 // loop_header
      %s14 = sphi 0, %s18
      %p15 = scmp.ge.s32.totalorder %s14, 5
      %s24 = sphi 0, %s26
      %s27 = sphi 0, %s24
      %s28 = sphi 0, %s27
      %s44 = sphi 0, %s28
      %s50 = sphi 0, %s52
      %s53 = sphi 0, %s50
      %s54 = sphi 0, %s53
      %s70 = sphi 0, %s54
      %s76 = sphi 0, %s78
      %s79 = sphi 0, %s76
      %s80 = sphi 0, %s79
      %s96 = sphi 0, %s80
      %s102 = sphi 0, %s104
      %s105 = sphi 0, %s102
      %s106 = sphi 0, %s105
      %s122 = sphi 0, %s106
      %s128 = sphi 0, %s130
      %s131 = sphi 0, %s128
      %s132 = sphi 0, %s131
      %s148 = sphi 0, %s132
      %s154 = sphi 0, %s156
      %s157 = sphi 0, %s154
      %s158 = sphi 0, %s157
      %s174 = sphi 0, %s158
    $region4: #{tpu_custom_call.1} parent=1 // loop_header_branch
      %17 = sbr.rel (%p15) target = $region8
    $region5: #{tpu_custom_call.1} parent=1 // loop_body
      %s19 = ssub.s32 %s14, 1
      %s20 = ssub.s32 %s14, 2
      %s21 = sadd.s32 %s14, 1
      %s22 = ssub.s32 %s14, %s21
      %p23 = scmp.eq.s32.totalorder %s22, 0
      %s25 = sadd.s32 %s24, 1
      %s26 = scalar_select %p23, %s24, %s25
      %p29 = pneg %p23
      %p30 = scmp.eq.s32.totalorder %s14, 2
      %p31 = por %p29, %p30
      %p32 = scmp.ne.s32.totalorder %s24, %s27
      %p33 = scmp.eq.s32.totalorder %s14, 0
      %p34 = por %p32, %p33
      %p35 = scmp.ne.s32.totalorder %s24, %s27
      %p36 = scmp.eq.s32.totalorder %s19, 2
      %p37 = por %p35, %p36
      %p38 = scmp.ne.s32.totalorder %s27, %s28
      %p39 = scmp.eq.s32.totalorder %s19, 0
      %p40 = por %p38, %p39
      %p41 = scmp.ne.s32.totalorder %s27, %s28
      %p42 = scmp.eq.s32.totalorder %s20, 2
      %p43 = por %p41, %p42
      %p45 = scmp.ne.s32.totalorder %s28, %s44
      %p46 = scmp.eq.s32.totalorder %s20, 0
      %p47 = por %p45, %p46
      %s48 = ssub.s32 %s14, %s21
      %p49 = scmp.eq.s32.totalorder %s48, 0
      %s51 = sadd.s32 %s50, 1
      %s52 = scalar_select %p49, %s50, %s51
      %p55 = pneg %p49
      %p56 = scmp.eq.s32.totalorder %s14, 2
      %p57 = por %p55, %p56
      %p58 = scmp.ne.s32.totalorder %s50, %s53
      %p59 = scmp.eq.s32.totalorder %s14, 0
      %p60 = por %p58, %p59
      %p61 = scmp.ne.s32.totalorder %s50, %s53
      %p62 = scmp.eq.s32.totalorder %s19, 2
      %p63 = por %p61, %p62
      %p64 = scmp.ne.s32.totalorder %s53, %s54
      %p65 = scmp.eq.s32.totalorder %s19, 0
      %p66 = por %p64, %p65
      %p67 = scmp.ne.s32.totalorder %s53, %s54
      %p68 = scmp.eq.s32.totalorder %s20, 2
      %p69 = por %p67, %p68
      %p71 = scmp.ne.s32.totalorder %s54, %s70
      %p72 = scmp.eq.s32.totalorder %s20, 0
      %p73 = por %p71, %p72
      %s74 = ssub.s32 %s14, %s21
      %p75 = scmp.eq.s32.totalorder %s74, 0
      %s77 = sadd.s32 %s76, 1
      %s78 = scalar_select %p75, %s76, %s77
      %p81 = pneg %p75
      %p82 = scmp.eq.s32.totalorder %s14, 2
      %p83 = por %p81, %p82
      %p84 = scmp.ne.s32.totalorder %s76, %s79
      %p85 = scmp.eq.s32.totalorder %s14, 0
      %p86 = por %p84, %p85
      %p87 = scmp.ne.s32.totalorder %s76, %s79
      %p88 = scmp.eq.s32.totalorder %s19, 2
      %p89 = por %p87, %p88
      %p90 = scmp.ne.s32.totalorder %s79, %s80
      %p91 = scmp.eq.s32.totalorder %s19, 0
      %p92 = por %p90, %p91
      %p93 = scmp.ne.s32.totalorder %s79, %s80
      %p94 = scmp.eq.s32.totalorder %s20, 2
      %p95 = por %p93, %p94
      %p97 = scmp.ne.s32.totalorder %s80, %s96
      %p98 = scmp.eq.s32.totalorder %s20, 0
      %p99 = por %p97, %p98
      %s100 = ssub.s32 %s14, %s21
      %p101 = scmp.eq.s32.totalorder %s100, 0
      %s103 = sadd.s32 %s102, 1
      %s104 = scalar_select %p101, %s102, %s103
      %p107 = pneg %p101
      %p108 = scmp.eq.s32.totalorder %s14, 2
      %p109 = por %p107, %p108
      %p110 = scmp.ne.s32.totalorder %s102, %s105
      %p111 = scmp.eq.s32.totalorder %s14, 0
      %p112 = por %p110, %p111
      %p113 = scmp.ne.s32.totalorder %s102, %s105
      %p114 = scmp.eq.s32.totalorder %s19, 2
      %p115 = por %p113, %p114
      %p116 = scmp.ne.s32.totalorder %s105, %s106
      %p117 = scmp.eq.s32.totalorder %s19, 0
      %p118 = por %p116, %p117
      %p119 = scmp.ne.s32.totalorder %s105, %s106
      %p120 = scmp.eq.s32.totalorder %s20, 2
      %p121 = por %p119, %p120
      %p123 = scmp.ne.s32.totalorder %s106, %s122
      %p124 = scmp.eq.s32.totalorder %s20, 0
      %p125 = por %p123, %p124
      %s126 = ssub.s32 %s14, %s21
      %p127 = scmp.eq.s32.totalorder %s126, 0
      %s129 = sadd.s32 %s128, 1
      %s130 = scalar_select %p127, %s128, %s129
      %p133 = pneg %p127
      %p134 = scmp.eq.s32.totalorder %s14, 2
      %p135 = por %p133, %p134
      %p136 = scmp.ne.s32.totalorder %s128, %s131
      %p137 = scmp.eq.s32.totalorder %s14, 0
      %p138 = por %p136, %p137
      %p139 = scmp.ne.s32.totalorder %s128, %s131
      %p140 = scmp.eq.s32.totalorder %s19, 2
      %p141 = por %p139, %p140
      %p142 = scmp.ne.s32.totalorder %s131, %s132
      %p143 = scmp.eq.s32.totalorder %s19, 0
      %p144 = por %p142, %p143
      %p145 = scmp.ne.s32.totalorder %s131, %s132
      %p146 = scmp.eq.s32.totalorder %s20, 2
      %p147 = por %p145, %p146
      %p149 = scmp.ne.s32.totalorder %s132, %s148
      %p150 = scmp.eq.s32.totalorder %s20, 0
      %p151 = por %p149, %p150
      %s152 = ssub.s32 %s14, %s21
      %p153 = scmp.eq.s32.totalorder %s152, 0
      %s155 = sadd.s32 %s154, 1
      %s156 = scalar_select %p153, %s154, %s155
      %p159 = pneg %p153
      %p160 = scmp.eq.s32.totalorder %s14, 2
      %p161 = por %p159, %p160
      %p162 = scmp.ne.s32.totalorder %s154, %s157
      %p163 = scmp.eq.s32.totalorder %s14, 0
      %p164 = por %p162, %p163
      %p165 = scmp.ne.s32.totalorder %s154, %s157
      %p166 = scmp.eq.s32.totalorder %s19, 2
      %p167 = por %p165, %p166
      %p168 = scmp.ne.s32.totalorder %s157, %s158
      %p169 = scmp.eq.s32.totalorder %s19, 0
      %p170 = por %p168, %p169
      %p171 = scmp.ne.s32.totalorder %s157, %s158
      %p172 = scmp.eq.s32.totalorder %s20, 2
      %p173 = por %p171, %p172
      %p175 = scmp.ne.s32.totalorder %s158, %s174
      %p176 = scmp.eq.s32.totalorder %s20, 0
      %p177 = por %p175, %p176
      %p178 = scmp.le.s32.totalorder 1, %s14
      %p179 = scmp.lt.s32.totalorder %s14, 4
      %p180 = pnand %p178, %p179
      %p181 = pneg %p180
      // Predicated region
      $region9: #{tpu_custom_call.1} parent=5 // pred_check
        _
      $region10: #{tpu_custom_call.1} parent=5 // pred_check_branch
        %183 = sbr.rel (%p180) target = $region12
      $region11: #{tpu_custom_call.1} parent=5 // pred_region
        %s184 = ssub.s32 %s14, 1
      $region12: #{tpu_custom_call.1} parent=5 // pred_fallthru
        _
      %p185 = scmp.lt.s32.totalorder %s14, 3
      // Predicated region
      $region13: #{tpu_custom_call.1} parent=5 // pred_check
        %p186 = pneg %p185
      $region14: #{tpu_custom_call.1} parent=5 // pred_check_branch
        %188 = sbr.rel (%p186) target = $region16
      $region15: #{tpu_custom_call.1} parent=5 // pred_region
        // Predicated region
        $region17: #{tpu_custom_call.1} parent=15 // pred_check
          %p189 = pneg %p34
        $region18: #{tpu_custom_call.1} parent=15 // pred_check_branch
          %191 = sbr.rel (%p189) target = $region20
        $region19: #{tpu_custom_call.1} parent=15 // pred_region
          %s192 = smul.u32 16, %s14
          %p193 = scmp.lt.s32.totalorder %s192, 47
          %s194 = scalar_select %p193, %s192, 47
          %s195 = scalar_lea.vmem %s0, %s194
          %s196 = smul.u32 16, %s14
        $region20: #{tpu_custom_call.1} parent=15 // pred_fallthru
          _
        // Predicated region
        $region21: #{tpu_custom_call.1} parent=15 // pred_check
          %p197 = pneg %p60
        $region22: #{tpu_custom_call.1} parent=15 // pred_check_branch
          %199 = sbr.rel (%p197) target = $region24
        $region23: #{tpu_custom_call.1} parent=15 // pred_region
          %s200 = smul.u32 16, %s14
          %p201 = scmp.lt.s32.totalorder %s200, 47
          %s202 = scalar_select %p201, %s200, 47
          %s203 = scalar_lea.vmem %s1, %s202
          %s204 = smul.u32 16, %s14
        $region24: #{tpu_custom_call.1} parent=15 // pred_fallthru
          _
        // Predicated region
        $region25: #{tpu_custom_call.1} parent=15 // pred_check
          %p205 = pneg %p86
        $region26: #{tpu_custom_call.1} parent=15 // pred_check_branch
          %207 = sbr.rel (%p205) target = $region28
        $region27: #{tpu_custom_call.1} parent=15 // pred_region
          %s208 = smul.u32 16, %s14
          %p209 = scmp.lt.s32.totalorder %s208, 47
          %s210 = scalar_select %p209, %s208, 47
          %s211 = smul.addr %s210, 4
          %s212 = smul.addr %s211, 8
          %s213 = scalar_lea.vmem %s2, %s212
          %s214 = smul.u32 16, %s14
        $region28: #{tpu_custom_call.1} parent=15 // pred_fallthru
          _
        // Predicated region
        $region29: #{tpu_custom_call.1} parent=15 // pred_check
          %p215 = pneg %p112
        $region30: #{tpu_custom_call.1} parent=15 // pred_check_branch
          %217 = sbr.rel (%p215) target = $region32
        $region31: #{tpu_custom_call.1} parent=15 // pred_region
          %p218 = scmp.lt.s32.totalorder %s14, 2
          %s219 = scalar_select %p218, %s14, 2
          %s220 = smul.addr %s219, 4
          %s221 = smul.addr %s220, 8
          %s222 = scalar_lea.vmem %s3, %s221
        $region32: #{tpu_custom_call.1} parent=15 // pred_fallthru
          _
        // Predicated region
        $region33: #{tpu_custom_call.1} parent=15 // pred_check
          %p223 = pneg %p138
        $region34: #{tpu_custom_call.1} parent=15 // pred_check_branch
          %225 = sbr.rel (%p223) target = $region36
        $region35: #{tpu_custom_call.1} parent=15 // pred_region
          %p226 = scmp.lt.s32.totalorder %s14, 2
          %s227 = scalar_select %p226, %s14, 2
          %s228 = smul.addr %s227, 4
          %s229 = scalar_lea.vmem %s4, %s228
        $region36: #{tpu_custom_call.1} parent=15 // pred_fallthru
          _
      $region16: #{tpu_custom_call.1} parent=5 // pred_fallthru
        _
      %p230 = scmp.le.s32.totalorder 1, %s14
      %p231 = scmp.lt.s32.totalorder %s14, 4
      %p232 = pnand %p230, %p231
      %p233 = pneg %p232
      // Predicated region
      $region37: #{tpu_custom_call.1} parent=5 // pred_check
        _
      $region38: #{tpu_custom_call.1} parent=5 // pred_check_branch
        %235 = sbr.rel (%p232) target = $region40
      $region39: #{tpu_custom_call.1} parent=5 // pred_region
        %s236 = ssub.s32 %s14, 1
        %s237 = smul.u32 16, %s19
        %p238 = scmp.lt.s32.totalorder %s237, 47
        %s239 = scalar_select %p238, %s237, 47
        %s240 = scalar_lea.vmem %s0, %s239
        %p241 = pneg %p40
        %p242 = pneg %p37
        %s243 = smul.u32 16, %s19
        %p244 = scmp.lt.s32.totalorder %s243, 47
        %s245 = scalar_select %p244, %s243, 47
        %s246 = scalar_lea.vmem %s1, %s245
        %p247 = pneg %p66
        %p248 = pneg %p63
        %s249 = smul.u32 16, %s19
        %p250 = scmp.lt.s32.totalorder %s249, 47
        %s251 = scalar_select %p250, %s249, 47
        %s252 = smul.addr %s251, 4
        %s253 = smul.addr %s252, 8
        %s254 = scalar_lea.vmem %s2, %s253
        %p255 = pneg %p92
        %p256 = pneg %p89
        %p257 = scmp.lt.s32.totalorder %s19, 2
        %s258 = scalar_select %p257, %s19, 2
        %s259 = smul.addr %s258, 4
        %s260 = smul.addr %s259, 8
        %s261 = scalar_lea.vmem %s3, %s260
        %p262 = pneg %p118
        %p263 = pneg %p115
        %p264 = scmp.lt.s32.totalorder %s19, 2
        %s265 = scalar_select %p264, %s19, 2
        %s266 = smul.addr %s265, 4
        %s267 = scalar_lea.vmem %s4, %s266
        %p268 = pneg %p144
        %p269 = pneg %p141
        %p270 = pneg %p170
        %p271 = pneg %p167
        %s272 = sand.u32 %s157, 1
        %s273 = scalar_lea.sflag [#allocation3], %s272
        %s274 = sand.u32 %s157, 1
        %s275 = smul.addr %s274, 8
        %s276 = scalar_lea.vmem [#allocation2], %s275
        %s277 = smul.u32 16, %s19
        %p278 = scmp.lt.s32.totalorder %s277, 47
        %s279 = scalar_select %p278, %s277, 47
        %s280 = scalar_lea.vmem %s0, %s279
        %s281 = smul.u32 16, %s19
        %s282 = smul.u32 16, %s19
        %p283 = scmp.lt.s32.totalorder %s282, 47
        %s284 = scalar_select %p283, %s282, 47
        %s285 = scalar_lea.vmem %s1, %s284
        %s286 = smul.u32 16, %s19
        %s287 = smul.u32 16, %s19
        %p288 = scmp.lt.s32.totalorder %s287, 47
        %s289 = scalar_select %p288, %s287, 47
        %s290 = smul.addr %s289, 4
        %s291 = smul.addr %s290, 8
        %s292 = scalar_lea.vmem %s2, %s291
        %s293 = smul.u32 16, %s19
        %p294 = scmp.lt.s32.totalorder %s19, 2
        %s295 = scalar_select %p294, %s19, 2
        %s296 = smul.addr %s295, 4
        %s297 = smul.addr %s296, 8
        %s298 = scalar_lea.vmem %s3, %s297
        %p299 = scmp.lt.s32.totalorder %s19, 2
        %s300 = scalar_select %p299, %s19, 2
        %s301 = smul.addr %s300, 4
        %s302 = scalar_lea.vmem %s4, %s301
        %v303 = vld [vmem:[%s280] sm:$0x1]
        %v304 = vld [vmem:[%s280 + $0x1] sm:$0x1]
        %v305 = vld [vmem:[%s280 + $0x2] sm:$0x1]
        %v306 = vld [vmem:[%s280 + $0x3] sm:$0x1]
        %v307 = vld [vmem:[%s280 + $0x4] sm:$0x1]
        %v308 = vld [vmem:[%s280 + $0x5] sm:$0x1]
        %v309 = vld [vmem:[%s280 + $0x6] sm:$0x1]
        %v310 = vld [vmem:[%s280 + $0x7] sm:$0x1]
        %v311 = vld [vmem:[%s280 + $0x8] sm:$0x1]
        %v312 = vld [vmem:[%s280 + $0x9] sm:$0x1]
        %v313 = vld [vmem:[%s280 + $0xa] sm:$0x1]
        %v314 = vld [vmem:[%s280 + $0xb] sm:$0x1]
        %v315 = vld [vmem:[%s280 + $0xc] sm:$0x1]
        %v316 = vld [vmem:[%s280 + $0xd] sm:$0x1]
        %v317 = vld [vmem:[%s280 + $0xe] sm:$0x1]
        %v318 = vld [vmem:[%s280 + $0xf] sm:$0x1]
        %v319 = vld [vmem:[%s285] sm:$0x1]
        %v320 = vld [vmem:[%s285 + $0x1] sm:$0x1]
        %v321 = vld [vmem:[%s285 + $0x2] sm:$0x1]
        %v322 = vld [vmem:[%s285 + $0x3] sm:$0x1]
        %v323 = vld [vmem:[%s285 + $0x4] sm:$0x1]
        %v324 = vld [vmem:[%s285 + $0x5] sm:$0x1]
        %v325 = vld [vmem:[%s285 + $0x6] sm:$0x1]
        %v326 = vld [vmem:[%s285 + $0x7] sm:$0x1]
        %v327 = vld [vmem:[%s285 + $0x8] sm:$0x1]
        %v328 = vld [vmem:[%s285 + $0x9] sm:$0x1]
        %v329 = vld [vmem:[%s285 + $0xa] sm:$0x1]
        %v330 = vld [vmem:[%s285 + $0xb] sm:$0x1]
        %v331 = vld [vmem:[%s285 + $0xc] sm:$0x1]
        %v332 = vld [vmem:[%s285 + $0xd] sm:$0x1]
        %v333 = vld [vmem:[%s285 + $0xe] sm:$0x1]
        %v334 = vld [vmem:[%s285 + $0xf] sm:$0x1]
        %v335 = vld [vmem:[%s292] sm:$0xff]
        %v336 = vld [vmem:[%s292 + $0x8] sm:$0xff]
        %v337 = vld [vmem:[%s292 + $0x10] sm:$0xff]
        %v338 = vld [vmem:[%s292 + $0x18] sm:$0xff]
        %v339 = vld [vmem:[%s292 + $0x20] sm:$0xff]
        %v340 = vld [vmem:[%s292 + $0x28] sm:$0xff]
        %v341 = vld [vmem:[%s292 + $0x30] sm:$0xff]
        %v342 = vld [vmem:[%s292 + $0x38] sm:$0xff]
        %v343 = vld [vmem:[%s292 + $0x40] sm:$0xff]
        %v344 = vld [vmem:[%s292 + $0x48] sm:$0xff]
        %v345 = vld [vmem:[%s292 + $0x50] sm:$0xff]
        %v346 = vld [vmem:[%s292 + $0x58] sm:$0xff]
        %v347 = vld [vmem:[%s292 + $0x60] sm:$0xff]
        %v348 = vld [vmem:[%s292 + $0x68] sm:$0xff]
        %v349 = vld [vmem:[%s292 + $0x70] sm:$0xff]
        %v350 = vld [vmem:[%s292 + $0x78] sm:$0xff]
        %v351 = vld [vmem:[%s292 + $0x80] sm:$0xff]
        %v352 = vld [vmem:[%s292 + $0x88] sm:$0xff]
        %v353 = vld [vmem:[%s292 + $0x90] sm:$0xff]
        %v354 = vld [vmem:[%s292 + $0x98] sm:$0xff]
        %v355 = vld [vmem:[%s292 + $0xa0] sm:$0xff]
        %v356 = vld [vmem:[%s292 + $0xa8] sm:$0xff]
        %v357 = vld [vmem:[%s292 + $0xb0] sm:$0xff]
        %v358 = vld [vmem:[%s292 + $0xb8] sm:$0xff]
        %v359 = vld [vmem:[%s292 + $0xc0] sm:$0xff]
        %v360 = vld [vmem:[%s292 + $0xc8] sm:$0xff]
        %v361 = vld [vmem:[%s292 + $0xd0] sm:$0xff]
        %v362 = vld [vmem:[%s292 + $0xd8] sm:$0xff]
        %v363 = vld [vmem:[%s292 + $0xe0] sm:$0xff]
        %v364 = vld [vmem:[%s292 + $0xe8] sm:$0xff]
        %v365 = vld [vmem:[%s292 + $0xf0] sm:$0xff]
        %v366 = vld [vmem:[%s292 + $0xf8] sm:$0xff]
        %v367 = vld [vmem:[%s292 + $0x100] sm:$0xff]
        %v368 = vld [vmem:[%s292 + $0x108] sm:$0xff]
        %v369 = vld [vmem:[%s292 + $0x110] sm:$0xff]
        %v370 = vld [vmem:[%s292 + $0x118] sm:$0xff]
        %v371 = vld [vmem:[%s292 + $0x120] sm:$0xff]
        %v372 = vld [vmem:[%s292 + $0x128] sm:$0xff]
        %v373 = vld [vmem:[%s292 + $0x130] sm:$0xff]
        %v374 = vld [vmem:[%s292 + $0x138] sm:$0xff]
        %v375 = vld [vmem:[%s292 + $0x140] sm:$0xff]
        %v376 = vld [vmem:[%s292 + $0x148] sm:$0xff]
        %v377 = vld [vmem:[%s292 + $0x150] sm:$0xff]
        %v378 = vld [vmem:[%s292 + $0x158] sm:$0xff]
        %v379 = vld [vmem:[%s292 + $0x160] sm:$0xff]
        %v380 = vld [vmem:[%s292 + $0x168] sm:$0xff]
        %v381 = vld [vmem:[%s292 + $0x170] sm:$0xff]
        %v382 = vld [vmem:[%s292 + $0x178] sm:$0xff]
        %v383 = vld [vmem:[%s292 + $0x180] sm:$0xff]
        %v384 = vld [vmem:[%s292 + $0x188] sm:$0xff]
        %v385 = vld [vmem:[%s292 + $0x190] sm:$0xff]
        %v386 = vld [vmem:[%s292 + $0x198] sm:$0xff]
        %v387 = vld [vmem:[%s292 + $0x1a0] sm:$0xff]
        %v388 = vld [vmem:[%s292 + $0x1a8] sm:$0xff]
        %v389 = vld [vmem:[%s292 + $0x1b0] sm:$0xff]
        %v390 = vld [vmem:[%s292 + $0x1b8] sm:$0xff]
        %v391 = vld [vmem:[%s292 + $0x1c0] sm:$0xff]
        %v392 = vld [vmem:[%s292 + $0x1c8] sm:$0xff]
        %v393 = vld [vmem:[%s292 + $0x1d0] sm:$0xff]
        %v394 = vld [vmem:[%s292 + $0x1d8] sm:$0xff]
        %v395 = vld [vmem:[%s292 + $0x1e0] sm:$0xff]
        %v396 = vld [vmem:[%s292 + $0x1e8] sm:$0xff]
        %v397 = vld [vmem:[%s292 + $0x1f0] sm:$0xff]
        %v398 = vld [vmem:[%s292 + $0x1f8] sm:$0xff]
        %400 = vset.pattern.permute.xlu0 0
        %401 = vperm.xlu0 %400, %v335
        %v402 = vpop.permute.xlu0 %401
        %405 = vset.pattern.permute.xlu0 0
        %406 = vperm.xlu0 %405, %v339
        %v407 = vpop.permute.xlu0 %406
        %410 = vset.pattern.permute.xlu0 0
        %411 = vperm.xlu0 %410, %v343
        %v412 = vpop.permute.xlu0 %411
        %415 = vset.pattern.permute.xlu0 0
        %416 = vperm.xlu0 %415, %v347
        %v417 = vpop.permute.xlu0 %416
        %420 = vset.pattern.permute.xlu0 0
        %421 = vperm.xlu0 %420, %v351
        %v422 = vpop.permute.xlu0 %421
        %425 = vset.pattern.permute.xlu0 0
        %426 = vperm.xlu0 %425, %v355
        %v427 = vpop.permute.xlu0 %426
        %430 = vset.pattern.permute.xlu0 0
        %431 = vperm.xlu0 %430, %v359
        %v432 = vpop.permute.xlu0 %431
        %435 = vset.pattern.permute.xlu0 0
        %436 = vperm.xlu0 %435, %v363
        %v437 = vpop.permute.xlu0 %436
        %440 = vset.pattern.permute.xlu0 0
        %441 = vperm.xlu0 %440, %v367
        %v442 = vpop.permute.xlu0 %441
        %445 = vset.pattern.permute.xlu0 0
        %446 = vperm.xlu0 %445, %v371
        %v447 = vpop.permute.xlu0 %446
        %450 = vset.pattern.permute.xlu0 0
        %451 = vperm.xlu0 %450, %v375
        %v452 = vpop.permute.xlu0 %451
        %455 = vset.pattern.permute.xlu0 0
        %456 = vperm.xlu0 %455, %v379
        %v457 = vpop.permute.xlu0 %456
        %460 = vset.pattern.permute.xlu0 0
        %461 = vperm.xlu0 %460, %v383
        %v462 = vpop.permute.xlu0 %461
        %465 = vset.pattern.permute.xlu0 0
        %466 = vperm.xlu0 %465, %v387
        %v467 = vpop.permute.xlu0 %466
        %470 = vset.pattern.permute.xlu0 0
        %471 = vperm.xlu0 %470, %v391
        %v472 = vpop.permute.xlu0 %471
        %475 = vset.pattern.permute.xlu0 0
        %476 = vperm.xlu0 %475, %v395
        %v477 = vpop.permute.xlu0 %476
        %v495 = vlaneseq
        %v496 = vshrl.u32 %v495, 7
        %v497 = vsub.s32 0, %v496
        %v498 = vrot.slane %v303, %v497
        %v499 = vlaneseq
        %v500 = vshrl.u32 %v499, 7
        %v501 = vsub.s32 0, %v500
        %v502 = vrot.slane %v304, %v501
        %v503 = vlaneseq
        %v504 = vshrl.u32 %v503, 7
        %v505 = vsub.s32 0, %v504
        %v506 = vrot.slane %v305, %v505
        %v507 = vlaneseq
        %v508 = vshrl.u32 %v507, 7
        %v509 = vsub.s32 0, %v508
        %v510 = vrot.slane %v306, %v509
        %v511 = vlaneseq
        %v512 = vshrl.u32 %v511, 7
        %v513 = vsub.s32 0, %v512
        %v514 = vrot.slane %v307, %v513
        %v515 = vlaneseq
        %v516 = vshrl.u32 %v515, 7
        %v517 = vsub.s32 0, %v516
        %v518 = vrot.slane %v308, %v517
        %v519 = vlaneseq
        %v520 = vshrl.u32 %v519, 7
        %v521 = vsub.s32 0, %v520
        %v522 = vrot.slane %v309, %v521
        %v523 = vlaneseq
        %v524 = vshrl.u32 %v523, 7
        %v525 = vsub.s32 0, %v524
        %v526 = vrot.slane %v310, %v525
        %v527 = vlaneseq
        %v528 = vshrl.u32 %v527, 7
        %v529 = vsub.s32 0, %v528
        %v530 = vrot.slane %v311, %v529
        %v531 = vlaneseq
        %v532 = vshrl.u32 %v531, 7
        %v533 = vsub.s32 0, %v532
        %v534 = vrot.slane %v312, %v533
        %v535 = vlaneseq
        %v536 = vshrl.u32 %v535, 7
        %v537 = vsub.s32 0, %v536
        %v538 = vrot.slane %v313, %v537
        %v539 = vlaneseq
        %v540 = vshrl.u32 %v539, 7
        %v541 = vsub.s32 0, %v540
        %v542 = vrot.slane %v314, %v541
        %v543 = vlaneseq
        %v544 = vshrl.u32 %v543, 7
        %v545 = vsub.s32 0, %v544
        %v546 = vrot.slane %v315, %v545
        %v547 = vlaneseq
        %v548 = vshrl.u32 %v547, 7
        %v549 = vsub.s32 0, %v548
        %v550 = vrot.slane %v316, %v549
        %v551 = vlaneseq
        %v552 = vshrl.u32 %v551, 7
        %v553 = vsub.s32 0, %v552
        %v554 = vrot.slane %v317, %v553
        %v555 = vlaneseq
        %v556 = vshrl.u32 %v555, 7
        %v557 = vsub.s32 0, %v556
        %v558 = vrot.slane %v318, %v557
        %v575 = vsub.f32 %v402, %v498
        %v576 = vsub.f32 %v407, %v502
        %v577 = vsub.f32 %v412, %v506
        %v578 = vsub.f32 %v417, %v510
        %v579 = vsub.f32 %v422, %v514
        %v580 = vsub.f32 %v427, %v518
        %v581 = vsub.f32 %v432, %v522
        %v582 = vsub.f32 %v437, %v526
        %v583 = vsub.f32 %v442, %v530
        %v584 = vsub.f32 %v447, %v534
        %v585 = vsub.f32 %v452, %v538
        %v586 = vsub.f32 %v457, %v542
        %v587 = vsub.f32 %v462, %v546
        %v588 = vsub.f32 %v467, %v550
        %v589 = vsub.f32 %v472, %v554
        %v590 = vsub.f32 %v477, %v558
        %v591 = vmul.f32 %v575, %v575
        %v592 = vmul.f32 %v576, %v576
        %v593 = vmul.f32 %v577, %v577
        %v594 = vmul.f32 %v578, %v578
        %v595 = vmul.f32 %v579, %v579
        %v596 = vmul.f32 %v580, %v580
        %v597 = vmul.f32 %v581, %v581
        %v598 = vmul.f32 %v582, %v582
        %v599 = vmul.f32 %v583, %v583
        %v600 = vmul.f32 %v584, %v584
        %v601 = vmul.f32 %v585, %v585
        %v602 = vmul.f32 %v586, %v586
        %v603 = vmul.f32 %v587, %v587
        %v604 = vmul.f32 %v588, %v588
        %v605 = vmul.f32 %v589, %v589
        %v606 = vmul.f32 %v590, %v590
        %608 = vset.pattern.permute.xlu0 0
        %609 = vperm.xlu0 %608, %v336
        %v610 = vpop.permute.xlu0 %609
        %613 = vset.pattern.permute.xlu0 0
        %614 = vperm.xlu0 %613, %v340
        %v615 = vpop.permute.xlu0 %614
        %618 = vset.pattern.permute.xlu0 0
        %619 = vperm.xlu0 %618, %v344
        %v620 = vpop.permute.xlu0 %619
        %623 = vset.pattern.permute.xlu0 0
        %624 = vperm.xlu0 %623, %v348
        %v625 = vpop.permute.xlu0 %624
        %628 = vset.pattern.permute.xlu0 0
        %629 = vperm.xlu0 %628, %v352
        %v630 = vpop.permute.xlu0 %629
        %633 = vset.pattern.permute.xlu0 0
        %634 = vperm.xlu0 %633, %v356
        %v635 = vpop.permute.xlu0 %634
        %638 = vset.pattern.permute.xlu0 0
        %639 = vperm.xlu0 %638, %v360
        %v640 = vpop.permute.xlu0 %639
        %643 = vset.pattern.permute.xlu0 0
        %644 = vperm.xlu0 %643, %v364
        %v645 = vpop.permute.xlu0 %644
        %648 = vset.pattern.permute.xlu0 0
        %649 = vperm.xlu0 %648, %v368
        %v650 = vpop.permute.xlu0 %649
        %653 = vset.pattern.permute.xlu0 0
        %654 = vperm.xlu0 %653, %v372
        %v655 = vpop.permute.xlu0 %654
        %658 = vset.pattern.permute.xlu0 0
        %659 = vperm.xlu0 %658, %v376
        %v660 = vpop.permute.xlu0 %659
        %663 = vset.pattern.permute.xlu0 0
        %664 = vperm.xlu0 %663, %v380
        %v665 = vpop.permute.xlu0 %664
        %668 = vset.pattern.permute.xlu0 0
        %669 = vperm.xlu0 %668, %v384
        %v670 = vpop.permute.xlu0 %669
        %673 = vset.pattern.permute.xlu0 0
        %674 = vperm.xlu0 %673, %v388
        %v675 = vpop.permute.xlu0 %674
        %678 = vset.pattern.permute.xlu0 0
        %679 = vperm.xlu0 %678, %v392
        %v680 = vpop.permute.xlu0 %679
        %683 = vset.pattern.permute.xlu0 0
        %684 = vperm.xlu0 %683, %v396
        %v685 = vpop.permute.xlu0 %684
        %v703 = vlaneseq
        %v704 = vshrl.u32 %v703, 7
        %v705 = vsub.s32 0, %v704
        %v706 = vrot.slane %v319, %v705
        %v707 = vlaneseq
        %v708 = vshrl.u32 %v707, 7
        %v709 = vsub.s32 0, %v708
        %v710 = vrot.slane %v320, %v709
        %v711 = vlaneseq
        %v712 = vshrl.u32 %v711, 7
        %v713 = vsub.s32 0, %v712
        %v714 = vrot.slane %v321, %v713
        %v715 = vlaneseq
        %v716 = vshrl.u32 %v715, 7
        %v717 = vsub.s32 0, %v716
        %v718 = vrot.slane %v322, %v717
        %v719 = vlaneseq
        %v720 = vshrl.u32 %v719, 7
        %v721 = vsub.s32 0, %v720
        %v722 = vrot.slane %v323, %v721
        %v723 = vlaneseq
        %v724 = vshrl.u32 %v723, 7
        %v725 = vsub.s32 0, %v724
        %v726 = vrot.slane %v324, %v725
        %v727 = vlaneseq
        %v728 = vshrl.u32 %v727, 7
        %v729 = vsub.s32 0, %v728
        %v730 = vrot.slane %v325, %v729
        %v731 = vlaneseq
        %v732 = vshrl.u32 %v731, 7
        %v733 = vsub.s32 0, %v732
        %v734 = vrot.slane %v326, %v733
        %v735 = vlaneseq
        %v736 = vshrl.u32 %v735, 7
        %v737 = vsub.s32 0, %v736
        %v738 = vrot.slane %v327, %v737
        %v739 = vlaneseq
        %v740 = vshrl.u32 %v739, 7
        %v741 = vsub.s32 0, %v740
        %v742 = vrot.slane %v328, %v741
        %v743 = vlaneseq
        %v744 = vshrl.u32 %v743, 7
        %v745 = vsub.s32 0, %v744
        %v746 = vrot.slane %v329, %v745
        %v747 = vlaneseq
        %v748 = vshrl.u32 %v747, 7
        %v749 = vsub.s32 0, %v748
        %v750 = vrot.slane %v330, %v749
        %v751 = vlaneseq
        %v752 = vshrl.u32 %v751, 7
        %v753 = vsub.s32 0, %v752
        %v754 = vrot.slane %v331, %v753
        %v755 = vlaneseq
        %v756 = vshrl.u32 %v755, 7
        %v757 = vsub.s32 0, %v756
        %v758 = vrot.slane %v332, %v757
        %v759 = vlaneseq
        %v760 = vshrl.u32 %v759, 7
        %v761 = vsub.s32 0, %v760
        %v762 = vrot.slane %v333, %v761
        %v763 = vlaneseq
        %v764 = vshrl.u32 %v763, 7
        %v765 = vsub.s32 0, %v764
        %v766 = vrot.slane %v334, %v765
        %v783 = vsub.f32 %v610, %v706
        %v784 = vsub.f32 %v615, %v710
        %v785 = vsub.f32 %v620, %v714
        %v786 = vsub.f32 %v625, %v718
        %v787 = vsub.f32 %v630, %v722
        %v788 = vsub.f32 %v635, %v726
        %v789 = vsub.f32 %v640, %v730
        %v790 = vsub.f32 %v645, %v734
        %v791 = vsub.f32 %v650, %v738
        %v792 = vsub.f32 %v655, %v742
        %v793 = vsub.f32 %v660, %v746
        %v794 = vsub.f32 %v665, %v750
        %v795 = vsub.f32 %v670, %v754
        %v796 = vsub.f32 %v675, %v758
        %v797 = vsub.f32 %v680, %v762
        %v798 = vsub.f32 %v685, %v766
        %v799 = vmul.f32 %v783, %v783
        %v800 = vmul.f32 %v784, %v784
        %v801 = vmul.f32 %v785, %v785
        %v802 = vmul.f32 %v786, %v786
        %v803 = vmul.f32 %v787, %v787
        %v804 = vmul.f32 %v788, %v788
        %v805 = vmul.f32 %v789, %v789
        %v806 = vmul.f32 %v790, %v790
        %v807 = vmul.f32 %v791, %v791
        %v808 = vmul.f32 %v792, %v792
        %v809 = vmul.f32 %v793, %v793
        %v810 = vmul.f32 %v794, %v794
        %v811 = vmul.f32 %v795, %v795
        %v812 = vmul.f32 %v796, %v796
        %v813 = vmul.f32 %v797, %v797
        %v814 = vmul.f32 %v798, %v798
        %v815 = vadd.f32 %v591, %v799
        %v816 = vadd.f32 %v592, %v800
        %v817 = vadd.f32 %v593, %v801
        %v818 = vadd.f32 %v594, %v802
        %v819 = vadd.f32 %v595, %v803
        %v820 = vadd.f32 %v596, %v804
        %v821 = vadd.f32 %v597, %v805
        %v822 = vadd.f32 %v598, %v806
        %v823 = vadd.f32 %v599, %v807
        %v824 = vadd.f32 %v600, %v808
        %v825 = vadd.f32 %v601, %v809
        %v826 = vadd.f32 %v602, %v810
        %v827 = vadd.f32 %v603, %v811
        %v828 = vadd.f32 %v604, %v812
        %v829 = vadd.f32 %v605, %v813
        %v830 = vadd.f32 %v606, %v814
        %831 = vmin.xlane.f32.xlu0 %v815
        %v832 = vpop.xlane.xlu0 %831
        %833 = vmin.xlane.f32.xlu0 %v816
        %v834 = vpop.xlane.xlu0 %833
        %835 = vmin.xlane.f32.xlu0 %v817
        %v836 = vpop.xlane.xlu0 %835
        %837 = vmin.xlane.f32.xlu0 %v818
        %v838 = vpop.xlane.xlu0 %837
        %839 = vmin.xlane.f32.xlu0 %v819
        %v840 = vpop.xlane.xlu0 %839
        %841 = vmin.xlane.f32.xlu0 %v820
        %v842 = vpop.xlane.xlu0 %841
        %843 = vmin.xlane.f32.xlu0 %v821
        %v844 = vpop.xlane.xlu0 %843
        %845 = vmin.xlane.f32.xlu0 %v822
        %v846 = vpop.xlane.xlu0 %845
        %847 = vmin.xlane.f32.xlu0 %v823
        %v848 = vpop.xlane.xlu0 %847
        %849 = vmin.xlane.f32.xlu0 %v824
        %v850 = vpop.xlane.xlu0 %849
        %851 = vmin.xlane.f32.xlu0 %v825
        %v852 = vpop.xlane.xlu0 %851
        %853 = vmin.xlane.f32.xlu0 %v826
        %v854 = vpop.xlane.xlu0 %853
        %855 = vmin.xlane.f32.xlu0 %v827
        %v856 = vpop.xlane.xlu0 %855
        %857 = vmin.xlane.f32.xlu0 %v828
        %v858 = vpop.xlane.xlu0 %857
        %859 = vmin.xlane.f32.xlu0 %v829
        %v860 = vpop.xlane.xlu0 %859
        %861 = vmin.xlane.f32.xlu0 %v830
        %v862 = vpop.xlane.xlu0 %861
        %v863 = vlaneseq
        %v864 = vand.u32 %v863, 127
        %vm865 = vcmp.eq.f32.partialorder %v815, %v832
        %vm866 = vcmp.eq.f32.partialorder %v816, %v834
        %vm867 = vcmp.eq.f32.partialorder %v817, %v836
        %vm868 = vcmp.eq.f32.partialorder %v818, %v838
        %vm869 = vcmp.eq.f32.partialorder %v819, %v840
        %vm870 = vcmp.eq.f32.partialorder %v820, %v842
        %vm871 = vcmp.eq.f32.partialorder %v821, %v844
        %vm872 = vcmp.eq.f32.partialorder %v822, %v846
        %vm873 = vcmp.eq.f32.partialorder %v823, %v848
        %vm874 = vcmp.eq.f32.partialorder %v824, %v850
        %vm875 = vcmp.eq.f32.partialorder %v825, %v852
        %vm876 = vcmp.eq.f32.partialorder %v826, %v854
        %vm877 = vcmp.eq.f32.partialorder %v827, %v856
        %vm878 = vcmp.eq.f32.partialorder %v828, %v858
        %vm879 = vcmp.eq.f32.partialorder %v829, %v860
        %vm880 = vcmp.eq.f32.partialorder %v830, %v862
        %v881 = vsel %vm865, %v864, 128
        %v882 = vsel %vm866, %v864, 128
        %v883 = vsel %vm867, %v864, 128
        %v884 = vsel %vm868, %v864, 128
        %v885 = vsel %vm869, %v864, 128
        %v886 = vsel %vm870, %v864, 128
        %v887 = vsel %vm871, %v864, 128
        %v888 = vsel %vm872, %v864, 128
        %v889 = vsel %vm873, %v864, 128
        %v890 = vsel %vm874, %v864, 128
        %v891 = vsel %vm875, %v864, 128
        %v892 = vsel %vm876, %v864, 128
        %v893 = vsel %vm877, %v864, 128
        %v894 = vsel %vm878, %v864, 128
        %v895 = vsel %vm879, %v864, 128
        %v896 = vsel %vm880, %v864, 128
        %v897 = vand.u32 %v881, 65535
        %v898 = vshra.s32 %v881, 16
        %v899 = vcvt.s32.f32 %v897
        %v900 = vcvt.s32.f32 %v898
        %901 = vmin.xlane.f32.xlu0 %v900
        %v902 = vpop.xlane.xlu0 %901
        %vm903 = vcmp.eq.f32.partialorder %v900, %v902
        %v904 = vsel %vm903, %v899, inf
        %905 = vmin.xlane.f32.xlu0 %v904
        %v906 = vpop.xlane.xlu0 %905
        %v907 = vcvt.f32.s32 %v906
        %v908 = vcvt.f32.s32 %v902
        %v909 = vshll.u32 %v908, 16
        %v910 = vadd.s32 %v909, %v907
        %v911 = vand.u32 %v882, 65535
        %v912 = vshra.s32 %v882, 16
        %v913 = vcvt.s32.f32 %v911
        %v914 = vcvt.s32.f32 %v912
        %915 = vmin.xlane.f32.xlu0 %v914
        %v916 = vpop.xlane.xlu0 %915
        %vm917 = vcmp.eq.f32.partialorder %v914, %v916
        %v918 = vsel %vm917, %v913, inf
        %919 = vmin.xlane.f32.xlu0 %v918
        %v920 = vpop.xlane.xlu0 %919
        %v921 = vcvt.f32.s32 %v920
        %v922 = vcvt.f32.s32 %v916
        %v923 = vshll.u32 %v922, 16
        %v924 = vadd.s32 %v923, %v921
        %v925 = vand.u32 %v883, 65535
        %v926 = vshra.s32 %v883, 16
        %v927 = vcvt.s32.f32 %v925
        %v928 = vcvt.s32.f32 %v926
        %929 = vmin.xlane.f32.xlu0 %v928
        %v930 = vpop.xlane.xlu0 %929
        %vm931 = vcmp.eq.f32.partialorder %v928, %v930
        %v932 = vsel %vm931, %v927, inf
        %933 = vmin.xlane.f32.xlu0 %v932
        %v934 = vpop.xlane.xlu0 %933
        %v935 = vcvt.f32.s32 %v934
        %v936 = vcvt.f32.s32 %v930
        %v937 = vshll.u32 %v936, 16
        %v938 = vadd.s32 %v937, %v935
        %v939 = vand.u32 %v884, 65535
        %v940 = vshra.s32 %v884, 16
        %v941 = vcvt.s32.f32 %v939
        %v942 = vcvt.s32.f32 %v940
        %943 = vmin.xlane.f32.xlu0 %v942
        %v944 = vpop.xlane.xlu0 %943
        %vm945 = vcmp.eq.f32.partialorder %v942, %v944
        %v946 = vsel %vm945, %v941, inf
        %947 = vmin.xlane.f32.xlu0 %v946
        %v948 = vpop.xlane.xlu0 %947
        %v949 = vcvt.f32.s32 %v948
        %v950 = vcvt.f32.s32 %v944
        %v951 = vshll.u32 %v950, 16
        %v952 = vadd.s32 %v951, %v949
        %v953 = vand.u32 %v885, 65535
        %v954 = vshra.s32 %v885, 16
        %v955 = vcvt.s32.f32 %v953
        %v956 = vcvt.s32.f32 %v954
        %957 = vmin.xlane.f32.xlu0 %v956
        %v958 = vpop.xlane.xlu0 %957
        %vm959 = vcmp.eq.f32.partialorder %v956, %v958
        %v960 = vsel %vm959, %v955, inf
        %961 = vmin.xlane.f32.xlu0 %v960
        %v962 = vpop.xlane.xlu0 %961
        %v963 = vcvt.f32.s32 %v962
        %v964 = vcvt.f32.s32 %v958
        %v965 = vshll.u32 %v964, 16
        %v966 = vadd.s32 %v965, %v963
        %v967 = vand.u32 %v886, 65535
        %v968 = vshra.s32 %v886, 16
        %v969 = vcvt.s32.f32 %v967
        %v970 = vcvt.s32.f32 %v968
        %971 = vmin.xlane.f32.xlu0 %v970
        %v972 = vpop.xlane.xlu0 %971
        %vm973 = vcmp.eq.f32.partialorder %v970, %v972
        %v974 = vsel %vm973, %v969, inf
        %975 = vmin.xlane.f32.xlu0 %v974
        %v976 = vpop.xlane.xlu0 %975
        %v977 = vcvt.f32.s32 %v976
        %v978 = vcvt.f32.s32 %v972
        %v979 = vshll.u32 %v978, 16
        %v980 = vadd.s32 %v979, %v977
        %v981 = vand.u32 %v887, 65535
        %v982 = vshra.s32 %v887, 16
        %v983 = vcvt.s32.f32 %v981
        %v984 = vcvt.s32.f32 %v982
        %985 = vmin.xlane.f32.xlu0 %v984
        %v986 = vpop.xlane.xlu0 %985
        %vm987 = vcmp.eq.f32.partialorder %v984, %v986
        %v988 = vsel %vm987, %v983, inf
        %989 = vmin.xlane.f32.xlu0 %v988
        %v990 = vpop.xlane.xlu0 %989
        %v991 = vcvt.f32.s32 %v990
        %v992 = vcvt.f32.s32 %v986
        %v993 = vshll.u32 %v992, 16
        %v994 = vadd.s32 %v993, %v991
        %v995 = vand.u32 %v888, 65535
        %v996 = vshra.s32 %v888, 16
        %v997 = vcvt.s32.f32 %v995
        %v998 = vcvt.s32.f32 %v996
        %999 = vmin.xlane.f32.xlu0 %v998
        %v1000 = vpop.xlane.xlu0 %999
        %vm1001 = vcmp.eq.f32.partialorder %v998, %v1000
        %v1002 = vsel %vm1001, %v997, inf
        %1003 = vmin.xlane.f32.xlu0 %v1002
        %v1004 = vpop.xlane.xlu0 %1003
        %v1005 = vcvt.f32.s32 %v1004
        %v1006 = vcvt.f32.s32 %v1000
        %v1007 = vshll.u32 %v1006, 16
        %v1008 = vadd.s32 %v1007, %v1005
        %v1009 = vand.u32 %v889, 65535
        %v1010 = vshra.s32 %v889, 16
        %v1011 = vcvt.s32.f32 %v1009
        %v1012 = vcvt.s32.f32 %v1010
        %1013 = vmin.xlane.f32.xlu0 %v1012
        %v1014 = vpop.xlane.xlu0 %1013
        %vm1015 = vcmp.eq.f32.partialorder %v1012, %v1014
        %v1016 = vsel %vm1015, %v1011, inf
        %1017 = vmin.xlane.f32.xlu0 %v1016
        %v1018 = vpop.xlane.xlu0 %1017
        %v1019 = vcvt.f32.s32 %v1018
        %v1020 = vcvt.f32.s32 %v1014
        %v1021 = vshll.u32 %v1020, 16
        %v1022 = vadd.s32 %v1021, %v1019
        %v1023 = vand.u32 %v890, 65535
        %v1024 = vshra.s32 %v890, 16
        %v1025 = vcvt.s32.f32 %v1023
        %v1026 = vcvt.s32.f32 %v1024
        %1027 = vmin.xlane.f32.xlu0 %v1026
        %v1028 = vpop.xlane.xlu0 %1027
        %vm1029 = vcmp.eq.f32.partialorder %v1026, %v1028
        %v1030 = vsel %vm1029, %v1025, inf
        %1031 = vmin.xlane.f32.xlu0 %v1030
        %v1032 = vpop.xlane.xlu0 %1031
        %v1033 = vcvt.f32.s32 %v1032
        %v1034 = vcvt.f32.s32 %v1028
        %v1035 = vshll.u32 %v1034, 16
        %v1036 = vadd.s32 %v1035, %v1033
        %v1037 = vand.u32 %v891, 65535
        %v1038 = vshra.s32 %v891, 16
        %v1039 = vcvt.s32.f32 %v1037
        %v1040 = vcvt.s32.f32 %v1038
        %1041 = vmin.xlane.f32.xlu0 %v1040
        %v1042 = vpop.xlane.xlu0 %1041
        %vm1043 = vcmp.eq.f32.partialorder %v1040, %v1042
        %v1044 = vsel %vm1043, %v1039, inf
        %1045 = vmin.xlane.f32.xlu0 %v1044
        %v1046 = vpop.xlane.xlu0 %1045
        %v1047 = vcvt.f32.s32 %v1046
        %v1048 = vcvt.f32.s32 %v1042
        %v1049 = vshll.u32 %v1048, 16
        %v1050 = vadd.s32 %v1049, %v1047
        %v1051 = vand.u32 %v892, 65535
        %v1052 = vshra.s32 %v892, 16
        %v1053 = vcvt.s32.f32 %v1051
        %v1054 = vcvt.s32.f32 %v1052
        %1055 = vmin.xlane.f32.xlu0 %v1054
        %v1056 = vpop.xlane.xlu0 %1055
        %vm1057 = vcmp.eq.f32.partialorder %v1054, %v1056
        %v1058 = vsel %vm1057, %v1053, inf
        %1059 = vmin.xlane.f32.xlu0 %v1058
        %v1060 = vpop.xlane.xlu0 %1059
        %v1061 = vcvt.f32.s32 %v1060
        %v1062 = vcvt.f32.s32 %v1056
        %v1063 = vshll.u32 %v1062, 16
        %v1064 = vadd.s32 %v1063, %v1061
        %v1065 = vand.u32 %v893, 65535
        %v1066 = vshra.s32 %v893, 16
        %v1067 = vcvt.s32.f32 %v1065
        %v1068 = vcvt.s32.f32 %v1066
        %1069 = vmin.xlane.f32.xlu0 %v1068
        %v1070 = vpop.xlane.xlu0 %1069
        %vm1071 = vcmp.eq.f32.partialorder %v1068, %v1070
        %v1072 = vsel %vm1071, %v1067, inf
        %1073 = vmin.xlane.f32.xlu0 %v1072
        %v1074 = vpop.xlane.xlu0 %1073
        %v1075 = vcvt.f32.s32 %v1074
        %v1076 = vcvt.f32.s32 %v1070
        %v1077 = vshll.u32 %v1076, 16
        %v1078 = vadd.s32 %v1077, %v1075
        %v1079 = vand.u32 %v894, 65535
        %v1080 = vshra.s32 %v894, 16
        %v1081 = vcvt.s32.f32 %v1079
        %v1082 = vcvt.s32.f32 %v1080
        %1083 = vmin.xlane.f32.xlu0 %v1082
        %v1084 = vpop.xlane.xlu0 %1083
        %vm1085 = vcmp.eq.f32.partialorder %v1082, %v1084
        %v1086 = vsel %vm1085, %v1081, inf
        %1087 = vmin.xlane.f32.xlu0 %v1086
        %v1088 = vpop.xlane.xlu0 %1087
        %v1089 = vcvt.f32.s32 %v1088
        %v1090 = vcvt.f32.s32 %v1084
        %v1091 = vshll.u32 %v1090, 16
        %v1092 = vadd.s32 %v1091, %v1089
        %v1093 = vand.u32 %v895, 65535
        %v1094 = vshra.s32 %v895, 16
        %v1095 = vcvt.s32.f32 %v1093
        %v1096 = vcvt.s32.f32 %v1094
        %1097 = vmin.xlane.f32.xlu0 %v1096
        %v1098 = vpop.xlane.xlu0 %1097
        %vm1099 = vcmp.eq.f32.partialorder %v1096, %v1098
        %v1100 = vsel %vm1099, %v1095, inf
        %1101 = vmin.xlane.f32.xlu0 %v1100
        %v1102 = vpop.xlane.xlu0 %1101
        %v1103 = vcvt.f32.s32 %v1102
        %v1104 = vcvt.f32.s32 %v1098
        %v1105 = vshll.u32 %v1104, 16
        %v1106 = vadd.s32 %v1105, %v1103
        %v1107 = vand.u32 %v896, 65535
        %v1108 = vshra.s32 %v896, 16
        %v1109 = vcvt.s32.f32 %v1107
        %v1110 = vcvt.s32.f32 %v1108
        %1111 = vmin.xlane.f32.xlu0 %v1110
        %v1112 = vpop.xlane.xlu0 %1111
        %vm1113 = vcmp.eq.f32.partialorder %v1110, %v1112
        %v1114 = vsel %vm1113, %v1109, inf
        %1115 = vmin.xlane.f32.xlu0 %v1114
        %v1116 = vpop.xlane.xlu0 %1115
        %v1117 = vcvt.f32.s32 %v1116
        %v1118 = vcvt.f32.s32 %v1112
        %v1119 = vshll.u32 %v1118, 16
        %v1120 = vadd.s32 %v1119, %v1117
        %vm1121 = vcmp.eq.s32.totalorder %v864, %v910
        %vm1122 = vcmp.eq.s32.totalorder %v864, %v924
        %vm1123 = vcmp.eq.s32.totalorder %v864, %v938
        %vm1124 = vcmp.eq.s32.totalorder %v864, %v952
        %vm1125 = vcmp.eq.s32.totalorder %v864, %v966
        %vm1126 = vcmp.eq.s32.totalorder %v864, %v980
        %vm1127 = vcmp.eq.s32.totalorder %v864, %v994
        %vm1128 = vcmp.eq.s32.totalorder %v864, %v1008
        %vm1129 = vcmp.eq.s32.totalorder %v864, %v1022
        %vm1130 = vcmp.eq.s32.totalorder %v864, %v1036
        %vm1131 = vcmp.eq.s32.totalorder %v864, %v1050
        %vm1132 = vcmp.eq.s32.totalorder %v864, %v1064
        %vm1133 = vcmp.eq.s32.totalorder %v864, %v1078
        %vm1134 = vcmp.eq.s32.totalorder %v864, %v1092
        %vm1135 = vcmp.eq.s32.totalorder %v864, %v1106
        %vm1136 = vcmp.eq.s32.totalorder %v864, %v1120
        %v1137 = vsel %vm1121, %v498, 0.0
        %v1138 = vsel %vm1122, %v502, 0.0
        %v1139 = vsel %vm1123, %v506, 0.0
        %v1140 = vsel %vm1124, %v510, 0.0
        %v1141 = vsel %vm1125, %v514, 0.0
        %v1142 = vsel %vm1126, %v518, 0.0
        %v1143 = vsel %vm1127, %v522, 0.0
        %v1144 = vsel %vm1128, %v526, 0.0
        %v1145 = vsel %vm1129, %v530, 0.0
        %v1146 = vsel %vm1130, %v534, 0.0
        %v1147 = vsel %vm1131, %v538, 0.0
        %v1148 = vsel %vm1132, %v542, 0.0
        %v1149 = vsel %vm1133, %v546, 0.0
        %v1150 = vsel %vm1134, %v550, 0.0
        %v1151 = vsel %vm1135, %v554, 0.0
        %v1152 = vsel %vm1136, %v558, 0.0
        %1153 = vadd.xlane.f32.xlu0 %v1137
        %v1154 = vpop.xlane.xlu0 %1153
        %1155 = vadd.xlane.f32.xlu0 %v1138
        %v1156 = vpop.xlane.xlu0 %1155
        %1157 = vadd.xlane.f32.xlu0 %v1139
        %v1158 = vpop.xlane.xlu0 %1157
        %1159 = vadd.xlane.f32.xlu0 %v1140
        %v1160 = vpop.xlane.xlu0 %1159
        %1161 = vadd.xlane.f32.xlu0 %v1141
        %v1162 = vpop.xlane.xlu0 %1161
        %1163 = vadd.xlane.f32.xlu0 %v1142
        %v1164 = vpop.xlane.xlu0 %1163
        %1165 = vadd.xlane.f32.xlu0 %v1143
        %v1166 = vpop.xlane.xlu0 %1165
        %1167 = vadd.xlane.f32.xlu0 %v1144
        %v1168 = vpop.xlane.xlu0 %1167
        %1169 = vadd.xlane.f32.xlu0 %v1145
        %v1170 = vpop.xlane.xlu0 %1169
        %1171 = vadd.xlane.f32.xlu0 %v1146
        %v1172 = vpop.xlane.xlu0 %1171
        %1173 = vadd.xlane.f32.xlu0 %v1147
        %v1174 = vpop.xlane.xlu0 %1173
        %1175 = vadd.xlane.f32.xlu0 %v1148
        %v1176 = vpop.xlane.xlu0 %1175
        %1177 = vadd.xlane.f32.xlu0 %v1149
        %v1178 = vpop.xlane.xlu0 %1177
        %1179 = vadd.xlane.f32.xlu0 %v1150
        %v1180 = vpop.xlane.xlu0 %1179
        %1181 = vadd.xlane.f32.xlu0 %v1151
        %v1182 = vpop.xlane.xlu0 %1181
        %1183 = vadd.xlane.f32.xlu0 %v1152
        %v1184 = vpop.xlane.xlu0 %1183
        %v1185 = vsel %vm1121, %v706, 0.0
        %v1186 = vsel %vm1122, %v710, 0.0
        %v1187 = vsel %vm1123, %v714, 0.0
        %v1188 = vsel %vm1124, %v718, 0.0
        %v1189 = vsel %vm1125, %v722, 0.0
        %v1190 = vsel %vm1126, %v726, 0.0
        %v1191 = vsel %vm1127, %v730, 0.0
        %v1192 = vsel %vm1128, %v734, 0.0
        %v1193 = vsel %vm1129, %v738, 0.0
        %v1194 = vsel %vm1130, %v742, 0.0
        %v1195 = vsel %vm1131, %v746, 0.0
        %v1196 = vsel %vm1132, %v750, 0.0
        %v1197 = vsel %vm1133, %v754, 0.0
        %v1198 = vsel %vm1134, %v758, 0.0
        %v1199 = vsel %vm1135, %v762, 0.0
        %v1200 = vsel %vm1136, %v766, 0.0
        %1201 = vadd.xlane.f32.xlu0 %v1185
        %v1202 = vpop.xlane.xlu0 %1201
        %1203 = vadd.xlane.f32.xlu0 %v1186
        %v1204 = vpop.xlane.xlu0 %1203
        %1205 = vadd.xlane.f32.xlu0 %v1187
        %v1206 = vpop.xlane.xlu0 %1205
        %1207 = vadd.xlane.f32.xlu0 %v1188
        %v1208 = vpop.xlane.xlu0 %1207
        %1209 = vadd.xlane.f32.xlu0 %v1189
        %v1210 = vpop.xlane.xlu0 %1209
        %1211 = vadd.xlane.f32.xlu0 %v1190
        %v1212 = vpop.xlane.xlu0 %1211
        %1213 = vadd.xlane.f32.xlu0 %v1191
        %v1214 = vpop.xlane.xlu0 %1213
        %1215 = vadd.xlane.f32.xlu0 %v1192
        %v1216 = vpop.xlane.xlu0 %1215
        %1217 = vadd.xlane.f32.xlu0 %v1193
        %v1218 = vpop.xlane.xlu0 %1217
        %1219 = vadd.xlane.f32.xlu0 %v1194
        %v1220 = vpop.xlane.xlu0 %1219
        %1221 = vadd.xlane.f32.xlu0 %v1195
        %v1222 = vpop.xlane.xlu0 %1221
        %1223 = vadd.xlane.f32.xlu0 %v1196
        %v1224 = vpop.xlane.xlu0 %1223
        %1225 = vadd.xlane.f32.xlu0 %v1197
        %v1226 = vpop.xlane.xlu0 %1225
        %1227 = vadd.xlane.f32.xlu0 %v1198
        %v1228 = vpop.xlane.xlu0 %1227
        %1229 = vadd.xlane.f32.xlu0 %v1199
        %v1230 = vpop.xlane.xlu0 %1229
        %1231 = vadd.xlane.f32.xlu0 %v1200
        %v1232 = vpop.xlane.xlu0 %1231
        %v1233 = vsub.f32 %v1154, %v335
        %v1234 = vsub.f32 %v1156, %v339
        %v1235 = vsub.f32 %v1158, %v343
        %v1236 = vsub.f32 %v1160, %v347
        %v1237 = vsub.f32 %v1162, %v351
        %v1238 = vsub.f32 %v1164, %v355
        %v1239 = vsub.f32 %v1166, %v359
        %v1240 = vsub.f32 %v1168, %v363
        %v1241 = vsub.f32 %v1170, %v367
        %v1242 = vsub.f32 %v1172, %v371
        %v1243 = vsub.f32 %v1174, %v375
        %v1244 = vsub.f32 %v1176, %v379
        %v1245 = vsub.f32 %v1178, %v383
        %v1246 = vsub.f32 %v1180, %v387
        %v1247 = vsub.f32 %v1182, %v391
        %v1248 = vsub.f32 %v1184, %v395
        %v1249 = vmul.f32 %v1233, 0.25
        %v1250 = vmul.f32 %v1234, 0.25
        %v1251 = vmul.f32 %v1235, 0.25
        %v1252 = vmul.f32 %v1236, 0.25
        %v1253 = vmul.f32 %v1237, 0.25
        %v1254 = vmul.f32 %v1238, 0.25
        %v1255 = vmul.f32 %v1239, 0.25
        %v1256 = vmul.f32 %v1240, 0.25
        %v1257 = vmul.f32 %v1241, 0.25
        %v1258 = vmul.f32 %v1242, 0.25
        %v1259 = vmul.f32 %v1243, 0.25
        %v1260 = vmul.f32 %v1244, 0.25
        %v1261 = vmul.f32 %v1245, 0.25
        %v1262 = vmul.f32 %v1246, 0.25
        %v1263 = vmul.f32 %v1247, 0.25
        %v1264 = vmul.f32 %v1248, 0.25
        %v1265 = vsub.f32 %v1202, %v336
        %v1266 = vsub.f32 %v1204, %v340
        %v1267 = vsub.f32 %v1206, %v344
        %v1268 = vsub.f32 %v1208, %v348
        %v1269 = vsub.f32 %v1210, %v352
        %v1270 = vsub.f32 %v1212, %v356
        %v1271 = vsub.f32 %v1214, %v360
        %v1272 = vsub.f32 %v1216, %v364
        %v1273 = vsub.f32 %v1218, %v368
        %v1274 = vsub.f32 %v1220, %v372
        %v1275 = vsub.f32 %v1222, %v376
        %v1276 = vsub.f32 %v1224, %v380
        %v1277 = vsub.f32 %v1226, %v384
        %v1278 = vsub.f32 %v1228, %v388
        %v1279 = vsub.f32 %v1230, %v392
        %v1280 = vsub.f32 %v1232, %v396
        %v1281 = vmul.f32 %v1265, 0.25
        %v1282 = vmul.f32 %v1266, 0.25
        %v1283 = vmul.f32 %v1267, 0.25
        %v1284 = vmul.f32 %v1268, 0.25
        %v1285 = vmul.f32 %v1269, 0.25
        %v1286 = vmul.f32 %v1270, 0.25
        %v1287 = vmul.f32 %v1271, 0.25
        %v1288 = vmul.f32 %v1272, 0.25
        %v1289 = vmul.f32 %v1273, 0.25
        %v1290 = vmul.f32 %v1274, 0.25
        %v1291 = vmul.f32 %v1275, 0.25
        %v1292 = vmul.f32 %v1276, 0.25
        %v1293 = vmul.f32 %v1277, 0.25
        %v1294 = vmul.f32 %v1278, 0.25
        %v1295 = vmul.f32 %v1279, 0.25
        %v1296 = vmul.f32 %v1280, 0.25
        %v1297 = vsub.f32 %v337, %v1249
        %v1298 = vsub.f32 %v341, %v1250
        %v1299 = vsub.f32 %v345, %v1251
        %v1300 = vsub.f32 %v349, %v1252
        %v1301 = vsub.f32 %v353, %v1253
        %v1302 = vsub.f32 %v357, %v1254
        %v1303 = vsub.f32 %v361, %v1255
        %v1304 = vsub.f32 %v365, %v1256
        %v1305 = vsub.f32 %v369, %v1257
        %v1306 = vsub.f32 %v373, %v1258
        %v1307 = vsub.f32 %v377, %v1259
        %v1308 = vsub.f32 %v381, %v1260
        %v1309 = vsub.f32 %v385, %v1261
        %v1310 = vsub.f32 %v389, %v1262
        %v1311 = vsub.f32 %v393, %v1263
        %v1312 = vsub.f32 %v397, %v1264
        %v1313 = vand.u32 2147483647, %v1297
        %v1314 = vand.u32 2147483647, %v1298
        %v1315 = vand.u32 2147483647, %v1299
        %v1316 = vand.u32 2147483647, %v1300
        %v1317 = vand.u32 2147483647, %v1301
        %v1318 = vand.u32 2147483647, %v1302
        %v1319 = vand.u32 2147483647, %v1303
        %v1320 = vand.u32 2147483647, %v1304
        %v1321 = vand.u32 2147483647, %v1305
        %v1322 = vand.u32 2147483647, %v1306
        %v1323 = vand.u32 2147483647, %v1307
        %v1324 = vand.u32 2147483647, %v1308
        %v1325 = vand.u32 2147483647, %v1309
        %v1326 = vand.u32 2147483647, %v1310
        %v1327 = vand.u32 2147483647, %v1311
        %v1328 = vand.u32 2147483647, %v1312
        %vm1329 = vcmp.lt.f32.partialorder %v1313, 0.25
        %vm1330 = vcmp.lt.f32.partialorder %v1314, 0.25
        %vm1331 = vcmp.lt.f32.partialorder %v1315, 0.25
        %vm1332 = vcmp.lt.f32.partialorder %v1316, 0.25
        %vm1333 = vcmp.lt.f32.partialorder %v1317, 0.25
        %vm1334 = vcmp.lt.f32.partialorder %v1318, 0.25
        %vm1335 = vcmp.lt.f32.partialorder %v1319, 0.25
        %vm1336 = vcmp.lt.f32.partialorder %v1320, 0.25
        %vm1337 = vcmp.lt.f32.partialorder %v1321, 0.25
        %vm1338 = vcmp.lt.f32.partialorder %v1322, 0.25
        %vm1339 = vcmp.lt.f32.partialorder %v1323, 0.25
        %vm1340 = vcmp.lt.f32.partialorder %v1324, 0.25
        %vm1341 = vcmp.lt.f32.partialorder %v1325, 0.25
        %vm1342 = vcmp.lt.f32.partialorder %v1326, 0.25
        %vm1343 = vcmp.lt.f32.partialorder %v1327, 0.25
        %vm1344 = vcmp.lt.f32.partialorder %v1328, 0.25
        %v1345 = vmul.f32 %v1313, 2.0
        %v1346 = vmul.f32 %v1314, 2.0
        %v1347 = vmul.f32 %v1315, 2.0
        %v1348 = vmul.f32 %v1316, 2.0
        %v1349 = vmul.f32 %v1317, 2.0
        %v1350 = vmul.f32 %v1318, 2.0
        %v1351 = vmul.f32 %v1319, 2.0
        %v1352 = vmul.f32 %v1320, 2.0
        %v1353 = vmul.f32 %v1321, 2.0
        %v1354 = vmul.f32 %v1322, 2.0
        %v1355 = vmul.f32 %v1323, 2.0
        %v1356 = vmul.f32 %v1324, 2.0
        %v1357 = vmul.f32 %v1325, 2.0
        %v1358 = vmul.f32 %v1326, 2.0
        %v1359 = vmul.f32 %v1327, 2.0
        %v1360 = vmul.f32 %v1328, 2.0
        %v1361 = vmul.f32 %v1345, %v1313
        %v1362 = vmul.f32 %v1346, %v1314
        %v1363 = vmul.f32 %v1347, %v1315
        %v1364 = vmul.f32 %v1348, %v1316
        %v1365 = vmul.f32 %v1349, %v1317
        %v1366 = vmul.f32 %v1350, %v1318
        %v1367 = vmul.f32 %v1351, %v1319
        %v1368 = vmul.f32 %v1352, %v1320
        %v1369 = vmul.f32 %v1353, %v1321
        %v1370 = vmul.f32 %v1354, %v1322
        %v1371 = vmul.f32 %v1355, %v1323
        %v1372 = vmul.f32 %v1356, %v1324
        %v1373 = vmul.f32 %v1357, %v1325
        %v1374 = vmul.f32 %v1358, %v1326
        %v1375 = vmul.f32 %v1359, %v1327
        %v1376 = vmul.f32 %v1360, %v1328
        %v1377 = vsub.f32 %v1313, 0.125
        %v1378 = vsub.f32 %v1314, 0.125
        %v1379 = vsub.f32 %v1315, 0.125
        %v1380 = vsub.f32 %v1316, 0.125
        %v1381 = vsub.f32 %v1317, 0.125
        %v1382 = vsub.f32 %v1318, 0.125
        %v1383 = vsub.f32 %v1319, 0.125
        %v1384 = vsub.f32 %v1320, 0.125
        %v1385 = vsub.f32 %v1321, 0.125
        %v1386 = vsub.f32 %v1322, 0.125
        %v1387 = vsub.f32 %v1323, 0.125
        %v1388 = vsub.f32 %v1324, 0.125
        %v1389 = vsub.f32 %v1325, 0.125
        %v1390 = vsub.f32 %v1326, 0.125
        %v1391 = vsub.f32 %v1327, 0.125
        %v1392 = vsub.f32 %v1328, 0.125
        %v1393 = vsel %vm1329, %v1361, %v1377
        %v1394 = vsel %vm1330, %v1362, %v1378
        %v1395 = vsel %vm1331, %v1363, %v1379
        %v1396 = vsel %vm1332, %v1364, %v1380
        %v1397 = vsel %vm1333, %v1365, %v1381
        %v1398 = vsel %vm1334, %v1366, %v1382
        %v1399 = vsel %vm1335, %v1367, %v1383
        %v1400 = vsel %vm1336, %v1368, %v1384
        %v1401 = vsel %vm1337, %v1369, %v1385
        %v1402 = vsel %vm1338, %v1370, %v1386
        %v1403 = vsel %vm1339, %v1371, %v1387
        %v1404 = vsel %vm1340, %v1372, %v1388
        %v1405 = vsel %vm1341, %v1373, %v1389
        %v1406 = vsel %vm1342, %v1374, %v1390
        %v1407 = vsel %vm1343, %v1375, %v1391
        %v1408 = vsel %vm1344, %v1376, %v1392
        %v1409 = vsub.f32 %v338, %v1281
        %v1410 = vsub.f32 %v342, %v1282
        %v1411 = vsub.f32 %v346, %v1283
        %v1412 = vsub.f32 %v350, %v1284
        %v1413 = vsub.f32 %v354, %v1285
        %v1414 = vsub.f32 %v358, %v1286
        %v1415 = vsub.f32 %v362, %v1287
        %v1416 = vsub.f32 %v366, %v1288
        %v1417 = vsub.f32 %v370, %v1289
        %v1418 = vsub.f32 %v374, %v1290
        %v1419 = vsub.f32 %v378, %v1291
        %v1420 = vsub.f32 %v382, %v1292
        %v1421 = vsub.f32 %v386, %v1293
        %v1422 = vsub.f32 %v390, %v1294
        %v1423 = vsub.f32 %v394, %v1295
        %v1424 = vsub.f32 %v398, %v1296
        %v1425 = vand.u32 2147483647, %v1409
        %v1426 = vand.u32 2147483647, %v1410
        %v1427 = vand.u32 2147483647, %v1411
        %v1428 = vand.u32 2147483647, %v1412
        %v1429 = vand.u32 2147483647, %v1413
        %v1430 = vand.u32 2147483647, %v1414
        %v1431 = vand.u32 2147483647, %v1415
        %v1432 = vand.u32 2147483647, %v1416
        %v1433 = vand.u32 2147483647, %v1417
        %v1434 = vand.u32 2147483647, %v1418
        %v1435 = vand.u32 2147483647, %v1419
        %v1436 = vand.u32 2147483647, %v1420
        %v1437 = vand.u32 2147483647, %v1421
        %v1438 = vand.u32 2147483647, %v1422
        %v1439 = vand.u32 2147483647, %v1423
        %v1440 = vand.u32 2147483647, %v1424
        %vm1441 = vcmp.lt.f32.partialorder %v1425, 0.25
        %vm1442 = vcmp.lt.f32.partialorder %v1426, 0.25
        %vm1443 = vcmp.lt.f32.partialorder %v1427, 0.25
        %vm1444 = vcmp.lt.f32.partialorder %v1428, 0.25
        %vm1445 = vcmp.lt.f32.partialorder %v1429, 0.25
        %vm1446 = vcmp.lt.f32.partialorder %v1430, 0.25
        %vm1447 = vcmp.lt.f32.partialorder %v1431, 0.25
        %vm1448 = vcmp.lt.f32.partialorder %v1432, 0.25
        %vm1449 = vcmp.lt.f32.partialorder %v1433, 0.25
        %vm1450 = vcmp.lt.f32.partialorder %v1434, 0.25
        %vm1451 = vcmp.lt.f32.partialorder %v1435, 0.25
        %vm1452 = vcmp.lt.f32.partialorder %v1436, 0.25
        %vm1453 = vcmp.lt.f32.partialorder %v1437, 0.25
        %vm1454 = vcmp.lt.f32.partialorder %v1438, 0.25
        %vm1455 = vcmp.lt.f32.partialorder %v1439, 0.25
        %vm1456 = vcmp.lt.f32.partialorder %v1440, 0.25
        %v1457 = vmul.f32 %v1425, 2.0
        %v1458 = vmul.f32 %v1426, 2.0
        %v1459 = vmul.f32 %v1427, 2.0
        %v1460 = vmul.f32 %v1428, 2.0
        %v1461 = vmul.f32 %v1429, 2.0
        %v1462 = vmul.f32 %v1430, 2.0
        %v1463 = vmul.f32 %v1431, 2.0
        %v1464 = vmul.f32 %v1432, 2.0
        %v1465 = vmul.f32 %v1433, 2.0
        %v1466 = vmul.f32 %v1434, 2.0
        %v1467 = vmul.f32 %v1435, 2.0
        %v1468 = vmul.f32 %v1436, 2.0
        %v1469 = vmul.f32 %v1437, 2.0
        %v1470 = vmul.f32 %v1438, 2.0
        %v1471 = vmul.f32 %v1439, 2.0
        %v1472 = vmul.f32 %v1440, 2.0
        %v1473 = vmul.f32 %v1457, %v1425
        %v1474 = vmul.f32 %v1458, %v1426
        %v1475 = vmul.f32 %v1459, %v1427
        %v1476 = vmul.f32 %v1460, %v1428
        %v1477 = vmul.f32 %v1461, %v1429
        %v1478 = vmul.f32 %v1462, %v1430
        %v1479 = vmul.f32 %v1463, %v1431
        %v1480 = vmul.f32 %v1464, %v1432
        %v1481 = vmul.f32 %v1465, %v1433
        %v1482 = vmul.f32 %v1466, %v1434
        %v1483 = vmul.f32 %v1467, %v1435
        %v1484 = vmul.f32 %v1468, %v1436
        %v1485 = vmul.f32 %v1469, %v1437
        %v1486 = vmul.f32 %v1470, %v1438
        %v1487 = vmul.f32 %v1471, %v1439
        %v1488 = vmul.f32 %v1472, %v1440
        %v1489 = vsub.f32 %v1425, 0.125
        %v1490 = vsub.f32 %v1426, 0.125
        %v1491 = vsub.f32 %v1427, 0.125
        %v1492 = vsub.f32 %v1428, 0.125
        %v1493 = vsub.f32 %v1429, 0.125
        %v1494 = vsub.f32 %v1430, 0.125
        %v1495 = vsub.f32 %v1431, 0.125
        %v1496 = vsub.f32 %v1432, 0.125
        %v1497 = vsub.f32 %v1433, 0.125
        %v1498 = vsub.f32 %v1434, 0.125
        %v1499 = vsub.f32 %v1435, 0.125
        %v1500 = vsub.f32 %v1436, 0.125
        %v1501 = vsub.f32 %v1437, 0.125
        %v1502 = vsub.f32 %v1438, 0.125
        %v1503 = vsub.f32 %v1439, 0.125
        %v1504 = vsub.f32 %v1440, 0.125
        %v1505 = vsel %vm1441, %v1473, %v1489
        %v1506 = vsel %vm1442, %v1474, %v1490
        %v1507 = vsel %vm1443, %v1475, %v1491
        %v1508 = vsel %vm1444, %v1476, %v1492
        %v1509 = vsel %vm1445, %v1477, %v1493
        %v1510 = vsel %vm1446, %v1478, %v1494
        %v1511 = vsel %vm1447, %v1479, %v1495
        %v1512 = vsel %vm1448, %v1480, %v1496
        %v1513 = vsel %vm1449, %v1481, %v1497
        %v1514 = vsel %vm1450, %v1482, %v1498
        %v1515 = vsel %vm1451, %v1483, %v1499
        %v1516 = vsel %vm1452, %v1484, %v1500
        %v1517 = vsel %vm1453, %v1485, %v1501
        %v1518 = vsel %vm1454, %v1486, %v1502
        %v1519 = vsel %vm1455, %v1487, %v1503
        %v1520 = vsel %vm1456, %v1488, %v1504
        %v1521 = vadd.f32 %v1393, %v1505
        %v1522 = vadd.f32 %v1394, %v1506
        %v1523 = vadd.f32 %v1395, %v1507
        %v1524 = vadd.f32 %v1396, %v1508
        %v1525 = vadd.f32 %v1397, %v1509
        %v1526 = vadd.f32 %v1398, %v1510
        %v1527 = vadd.f32 %v1399, %v1511
        %v1528 = vadd.f32 %v1400, %v1512
        %v1529 = vadd.f32 %v1401, %v1513
        %v1530 = vadd.f32 %v1402, %v1514
        %v1531 = vadd.f32 %v1403, %v1515
        %v1532 = vadd.f32 %v1404, %v1516
        %v1533 = vadd.f32 %v1405, %v1517
        %v1534 = vadd.f32 %v1406, %v1518
        %v1535 = vadd.f32 %v1407, %v1519
        %v1536 = vadd.f32 %v1408, %v1520
        %vm1537 = vcmask 7168
        %v1538 = vsel %vm1537, %v1521, 0.0
        %v1539 = vsel %vm1537, %v1522, 0.0
        %v1540 = vadd.f32 %v1538, %v1539
        %v1541 = vsel %vm1537, %v1523, 0.0
        %v1542 = vadd.f32 %v1540, %v1541
        %v1543 = vsel %vm1537, %v1524, 0.0
        %v1544 = vadd.f32 %v1542, %v1543
        %v1545 = vsel %vm1537, %v1525, 0.0
        %v1546 = vadd.f32 %v1544, %v1545
        %v1547 = vsel %vm1537, %v1526, 0.0
        %v1548 = vadd.f32 %v1546, %v1547
        %v1549 = vsel %vm1537, %v1527, 0.0
        %v1550 = vadd.f32 %v1548, %v1549
        %v1551 = vsel %vm1537, %v1528, 0.0
        %v1552 = vadd.f32 %v1550, %v1551
        %v1553 = vsel %vm1537, %v1529, 0.0
        %v1554 = vadd.f32 %v1552, %v1553
        %v1555 = vsel %vm1537, %v1530, 0.0
        %v1556 = vadd.f32 %v1554, %v1555
        %v1557 = vsel %vm1537, %v1531, 0.0
        %v1558 = vadd.f32 %v1556, %v1557
        %v1559 = vsel %vm1537, %v1532, 0.0
        %v1560 = vadd.f32 %v1558, %v1559
        %v1561 = vsel %vm1537, %v1533, 0.0
        %v1562 = vadd.f32 %v1560, %v1561
        %v1563 = vsel %vm1537, %v1534, 0.0
        %v1564 = vadd.f32 %v1562, %v1563
        %v1565 = vsel %vm1537, %v1535, 0.0
        %v1566 = vadd.f32 %v1564, %v1565
        %v1567 = vsel %vm1537, %v1536, 0.0
        %v1568 = vadd.f32 %v1566, %v1567
        %1569 = vadd.xlane.f32.xlu0 %v1568
        %v1570 = vpop.xlane.xlu0 %1569
        %v1571 = vrot.slane %v1570, 4
        %v1572 = vadd.f32 %v1570, %v1571
        %v1573 = vrot.slane %v1572, 2
        %v1574 = vadd.f32 %v1572, %v1573
        %v1575 = vrot.slane %v1574, 1
        %v1576 = vadd.f32 %v1574, %v1575
        %s1577 = vtos %v1576
        %v1578 = vld [vmem:[%s298] sm:$0xff]
        %v1579 = vld [vmem:[%s298 + $0x8] sm:$0xff]
        %v1580 = vld [vmem:[%s298 + $0x10] sm:$0xff]
        %v1581 = vld [vmem:[%s298 + $0x18] sm:$0xff]
        %v1582 = vld [vmem:[%s302] sm:$0x7]
        %v1583 = vlaneseq
        %v1584 = vshrl.u32 %v1583, 7
        %v1585 = vsub.s32 0, %v1584
        %v1586 = vrot.slane %v1582, %v1585
        %v1587 = vsub.f32 %v1578, %v1586
        %v1588 = vmul.f32 %v1587, %v1587
        %v1589 = vlaneseq
        %v1590 = vshrl.u32 %v1589, 7
        %v1591 = vsub.s32 1, %v1590
        %v1592 = vrot.slane %v1582, %v1591
        %v1593 = vsub.f32 %v1579, %v1592
        %v1594 = vmul.f32 %v1593, %v1593
        %v1595 = vadd.f32 %v1588, %v1594
        %v1596 = vrot.slane %v1595, 4
        %v1597 = vmin.f32 %v1595, %v1596
        %v1598 = vrot.slane %v1597, 2
        %v1599 = vmin.f32 %v1597, %v1598
        %v1600 = vrot.slane %v1599, 1
        %v1601 = vmin.f32 %v1599, %v1600
        %v1602 = vlaneseq
        %v1603 = vshrl.u32 %v1602, 7
        %vm1604 = vcmp.eq.f32.partialorder %v1595, %v1601
        %v1605 = vsel %vm1604, %v1603, 8
        %v1606 = vrot.slane %v1605, 4
        %vm1607 = vcmp.lt.s32.totalorder %v1605, %v1606
        %v1608 = vsel %vm1607, %v1605, %v1606
        %v1609 = vrot.slane %v1608, 2
        %vm1610 = vcmp.lt.s32.totalorder %v1608, %v1609
        %v1611 = vsel %vm1610, %v1608, %v1609
        %v1612 = vrot.slane %v1611, 1
        %vm1613 = vcmp.lt.s32.totalorder %v1611, %v1612
        %v1614 = vsel %vm1613, %v1611, %v1612
        %vm1615 = vcmp.eq.s32.totalorder %v1603, %v1614
        %v1616 = vsel %vm1615, %v1578, 0.0
        %v1617 = vrot.slane %v1616, 4
        %v1618 = vadd.f32 %v1616, %v1617
        %v1619 = vrot.slane %v1618, 2
        %v1620 = vadd.f32 %v1618, %v1619
        %v1621 = vrot.slane %v1620, 1
        %v1622 = vadd.f32 %v1620, %v1621
        %v1623 = vsel %vm1615, %v1579, 0.0
        %v1624 = vrot.slane %v1623, 4
        %v1625 = vadd.f32 %v1623, %v1624
        %v1626 = vrot.slane %v1625, 2
        %v1627 = vadd.f32 %v1625, %v1626
        %v1628 = vrot.slane %v1627, 1
        %v1629 = vadd.f32 %v1627, %v1628
        %v1630 = vsel %vm1615, %v1580, 0.0
        %v1631 = vrot.slane %v1630, 4
        %v1632 = vadd.f32 %v1630, %v1631
        %v1633 = vrot.slane %v1632, 2
        %v1634 = vadd.f32 %v1632, %v1633
        %v1635 = vrot.slane %v1634, 1
        %v1636 = vadd.f32 %v1634, %v1635
        %v1637 = vsel %vm1615, %v1581, 0.0
        %v1638 = vrot.slane %v1637, 4
        %v1639 = vadd.f32 %v1637, %v1638
        %v1640 = vrot.slane %v1639, 2
        %v1641 = vadd.f32 %v1639, %v1640
        %v1642 = vrot.slane %v1641, 1
        %v1643 = vadd.f32 %v1641, %v1642
        %v1644 = vsub.f32 %v1582, %v1622
        %v1645 = vmul.f32 %v1644, 0.25
        %v1646 = vsub.f32 %v1582, %v1629
        %v1647 = vmul.f32 %v1646, 0.25
        %v1648 = vsub.f32 %v1636, %v1645
        %v1649 = vand.u32 2147483647, %v1648
        %vm1650 = vcmp.lt.f32.partialorder %v1649, 0.25
        %v1651 = vmul.f32 %v1649, 2.0
        %v1652 = vmul.f32 %v1651, %v1649
        %v1653 = vsub.f32 %v1649, 0.125
        %v1654 = vsel %vm1650, %v1652, %v1653
        %v1655 = vsub.f32 %v1643, %v1647
        %v1656 = vand.u32 2147483647, %v1655
        %vm1657 = vcmp.lt.f32.partialorder %v1656, 0.25
        %v1658 = vmul.f32 %v1656, 2.0
        %v1659 = vmul.f32 %v1658, %v1656
        %v1660 = vsub.f32 %v1656, 0.125
        %v1661 = vsel %vm1657, %v1659, %v1660
        %v1663 = vrot.slane %v1661, 1
        %v1665 = vadd.f32 %v1654, %v1663
        %v1667 = vrot.slane %v1582, 2
        %v1669 = vmul.f32 %v1665, %v1667
        %vm1670 = vcmask 1040384
        %v1671 = vsel %vm1670, %v1669, 0.0
        %1672 = vadd.xlane.f32.xlu0 %v1671
        %v1673 = vpop.xlane.xlu0 %1672
        %v1674 = vrot.slane %v1673, 4
        %v1675 = vadd.f32 %v1673, %v1674
        %v1676 = vrot.slane %v1675, 2
        %v1677 = vadd.f32 %v1675, %v1676
        %v1678 = vrot.slane %v1677, 1
        %v1679 = vadd.f32 %v1677, %v1678
        %s1680 = vtos %v1679
        %v1681 = vsel %vm1670, %v1667, 0.0
        %1682 = vadd.xlane.f32.xlu0 %v1681
        %v1683 = vpop.xlane.xlu0 %1682
        %v1684 = vrot.slane %v1683, 4
        %v1685 = vadd.f32 %v1683, %v1684
        %v1686 = vrot.slane %v1685, 2
        %v1687 = vadd.f32 %v1685, %v1686
        %v1688 = vrot.slane %v1687, 1
        %v1689 = vadd.f32 %v1687, %v1688
        %s1690 = vtos %v1689
        %s1691 = smul.f32 %s1690, 2.0
        %vm1692 = vcmp.eq.s32.totalorder %v1603, 0
        %vm1693 = vcmp.eq.s32.totalorder %v864, 0
        %vm1694 = vmand %vm1692, %vm1693
        %v1695 = vstv %s1577
        %v1696 = vsel %vm1694, %v1695, 0.0
        %vm1697 = vcmp.eq.s32.totalorder %v864, 1
        %vm1698 = vmand %vm1692, %vm1697
        %v1699 = vstv %s1680
        %v1700 = vsel %vm1698, %v1699, 0.0
        %v1701 = vadd.f32 %v1696, %v1700
        %vm1702 = vcmp.eq.s32.totalorder %v864, 2
        %vm1703 = vmand %vm1692, %vm1702
        %v1704 = vstv %s1691
        %v1705 = vsel %vm1703, %v1704, 0.0
        %v1706 = vadd.f32 %v1701, %v1705
        %1707 = vst [vmem:[%s276] sm:$0xff] %v1706
        %s1708 = sand.u32 %s157, 1
        %s1709 = scalar_lea.sflag [#allocation3], %s1708
        %s1710 = sand.u32 %s157, 1
        %s1711 = smul.addr %s1710, 8
        %s1712 = scalar_lea.vmem [#allocation2], %s1711
        // Predicated region
        $region41: #{tpu_custom_call.1} parent=39 // pred_check
          %p1713 = pneg %p167
        $region42: #{tpu_custom_call.1} parent=39 // pred_check_branch
          %1715 = sbr.rel (%p1713) target = $region44
        $region43: #{tpu_custom_call.1} parent=39 // pred_region
          %s1717 = ssub.s32 128, 128
          %1718 = vsyncadd %s1709, %s1717
          %s1719 = smul.addr %s19, 128
          %s1720 = scalar_lea.hbm %s5, %s1719
          %s1722 = sshll.u32 %s1712, 4
          %s1723 = int_to_ptr.vmem [resolvable:$true] %s1722
          %1725 = dma.vmem_to_hbm [thread:$0]  %s1723, 128, %s1720, %s1709
        $region44: #{tpu_custom_call.1} parent=39 // pred_fallthru
          _
      $region40: #{tpu_custom_call.1} parent=5 // pred_fallthru
        _
      %p1726 = scmp.le.s32.totalorder 2, %s14
      // Predicated region
      $region45: #{tpu_custom_call.1} parent=5 // pred_check
        %p1727 = pneg %p1726
      $region46: #{tpu_custom_call.1} parent=5 // pred_check_branch
        %1729 = sbr.rel (%p1727) target = $region48
      $region47: #{tpu_custom_call.1} parent=5 // pred_region
        %s1730 = ssub.s32 %s14, 2
        // Predicated region
        $region49: #{tpu_custom_call.1} parent=47 // pred_check
          %p1731 = pneg %p173
        $region50: #{tpu_custom_call.1} parent=47 // pred_check_branch
          %1733 = sbr.rel (%p1731) target = $region52
        $region51: #{tpu_custom_call.1} parent=47 // pred_region
          %s1734 = sand.u32 %s158, 1
          %s1735 = scalar_lea.sflag [#allocation3], %s1734
          %s1736 = sand.u32 %s158, 1
          %s1737 = smul.addr %s1736, 8
          %s1738 = scalar_lea.vmem [#allocation2], %s1737
          %1739 = dma.done %s1735, 128
        $region52: #{tpu_custom_call.1} parent=47 // pred_fallthru
          _
      $region48: #{tpu_custom_call.1} parent=5 // pred_fallthru
        _
    $region6: #{tpu_custom_call.1} parent=1 // loop_footer
      %s18 = sadd.s32 1, %s14
    $region7: #{tpu_custom_call.1} parent=1 // loop_footer_branch
      %13 = sbr.rel target = $region3
    $region8: #{tpu_custom_call.1} parent=1 // loop_exit
      _
    %1740 = vsyncpa [#allocation3], 1
    %s1741 = scalar_lea.sflag [#allocation3], 1
    %1742 = vsyncpa %s1741, 1

</llo_original>
